<compile_context>
chip_gen: v5e
topology: v5e:2x2
jax: 0.10.0
libtpu: 0.0.40
codegen_flags: <defaults>
</compile_context>

<pallas_src>
import functools

import numpy as np
import jax
import jax.numpy as jnp
from jax.experimental import pallas as pl
from jax.experimental.pallas import tpu as pltpu

LN_EPS = 1e-5  # torch.nn.LayerNorm default


# --------------------------------------------------------------------------- #
# Pallas kernel: fused permute + LayerNorm -> Linear(bf16 MXU) -> LayerNorm
# --------------------------------------------------------------------------- #
def _adapter_kernel(x_ref, w_ref, b_ref, g2_ref, b2_ref, o_ref):
    # x_ref: (1, C, s_tile) block of the NCHW-flattened feature map.
    x = x_ref[0].astype(jnp.float32)          # (C, s_tile)
    x = x.T                                    # (s_tile, C) — in-kernel transpose (XLU),
                                               # replaces the out-of-kernel HBM permute.

    # LayerNorm over the feature (lane) axis.  LN1 gamma/beta are folded into
    # the Linear weight/bias on the host, so only the normalization remains.
    mu = jnp.mean(x, axis=-1, keepdims=True)
    xc = x - mu
    var = jnp.mean(xc * xc, axis=-1, keepdims=True)
    xn = xc * jax.lax.rsqrt(var + LN_EPS)

    # Linear: (s_tile, C) @ (C, D) + bias — bf16 operands into the MXU,
    # f32 accumulation.
    y = jnp.dot(xn.astype(w_ref.dtype), w_ref[...],
                preferred_element_type=jnp.float32)
    y = y + b_ref[...].astype(jnp.float32)

    # Second LayerNorm over D (lanes).
    mu2 = jnp.mean(y, axis=-1, keepdims=True)
    yc = y - mu2
    var2 = jnp.mean(yc * yc, axis=-1, keepdims=True)
    yn = yc * jax.lax.rsqrt(var2 + LN_EPS)
    o_ref[0] = (yn * g2_ref[...].astype(jnp.float32)
                + b2_ref[...].astype(jnp.float32)).astype(o_ref.dtype)


@functools.partial(jax.jit, static_argnames=("max_tile_s", "out_dtype"))
def adapter_pallas(feat_ncs, w_eff, b_eff, g2, b2, *,
                   max_tile_s=512, out_dtype=jnp.bfloat16):
    """feat_ncs: (B, C, S) channel-major features -> (B, S, D) adapter output.

    Fuses the (0,2,1) permute, LayerNorm(C), Linear(C,D) and LayerNorm(D) into a
    single pass over HBM.  `max_tile_s` is the token-tile size (default 512,
    a multiple of both 128 and 256 so it maps onto the MXU of all TPU
    generations; pick per-generation at the call site if desired).
    """
    B, C, S = feat_ncs.shape
    D = w_eff.shape[1]

    # Clamp the token tile to S for small feature maps; otherwise use the large
    # tile and let pl.cdiv handle the ragged tail (no divisibility assert).
    s_tile = S if S <= max_tile_s else max_tile_s
    grid = (B, pl.cdiv(S, s_tile))

    in_itemsize = np.dtype(feat_ncs.dtype).itemsize
    w_itemsize = np.dtype(w_eff.dtype).itemsize
    out_itemsize = np.dtype(out_dtype).itemsize

    # Advisory cost estimate for the XLA scheduler around the custom call.
    cost = pl.CostEstimate(
        flops=2 * B * S * C * D + 8 * B * S * (C + D),
        transcendentals=2 * B * S,                       # two rsqrt per token
        bytes_accessed=B * S * C * in_itemsize + C * D * w_itemsize
                       + B * S * D * out_itemsize + 3 * D * 4,
    )

    # Explicit VMEM budget: double-buffered input/output blocks + weights.
    # Keep well under v7x's 64 MiB physical VMEM (32 MiB scoped default).
    vmem_need = (2 * (C * s_tile * in_itemsize + s_tile * D * out_itemsize)
                 + 2 * (C * D * w_itemsize) + 8 * D * 4 + (1 << 20))
    vmem_limit = int(min(max(2 * vmem_need, 32 * 1024 * 1024), 48 * 1024 * 1024))

    return pl.pallas_call(
        _adapter_kernel,
        out_shape=jax.ShapeDtypeStruct((B, S, D), out_dtype),
        grid_spec=pltpu.PrefetchScalarGridSpec(
            num_scalar_prefetch=0,
            grid=grid,
            in_specs=[
                pl.BlockSpec((1, C, s_tile), lambda b, s: (b, 0, s)),  # feature block
                pl.BlockSpec((C, D), lambda b, s: (0, 0)),             # folded weight (bf16)
                pl.BlockSpec((1, D), lambda b, s: (0, 0)),             # folded bias
                pl.BlockSpec((1, D), lambda b, s: (0, 0)),             # LN2 gamma
                pl.BlockSpec((1, D), lambda b, s: (0, 0)),             # LN2 beta
            ],
            out_specs=pl.BlockSpec((1, s_tile, D), lambda b, s: (b, s, 0)),
        ),
        compiler_params=pltpu.CompilerParams(
            dimension_semantics=("parallel", "parallel"),
            vmem_limit_bytes=vmem_limit),
        cost_estimate=cost,
    )(feat_ncs, w_eff, b_eff, g2, b2)


# --------------------------------------------------------------------------- #
# Model wrapper (forward-pass semantics of ImageToTextModel)
# --------------------------------------------------------------------------- #
class ImageToTextPallas:
    def __init__(self, key, image_feat_size=256, text_feat_size=128,
                 vocab_size=64, prompt_embedding=False):
        self.image_feat_size = image_feat_size
        self.text_feat_size = text_feat_size
        self.prompt_embedding = prompt_embedding

        k_w, k_b, k_wte, k_prompt = jax.random.split(key, 4)

        # adapter = LayerNorm(C) -> Linear(C, D) -> LayerNorm(D); torch default init.
        self.ln1_gamma = jnp.ones((image_feat_size,), jnp.float32)
        self.ln1_beta = jnp.zeros((image_feat_size,), jnp.float32)
        lin_w_f32 = (jax.random.normal(k_w, (image_feat_size, text_feat_size),
                                       jnp.float32) / jnp.sqrt(image_feat_size))
        # Store the Linear weight in bf16: MXU-native, halves weight DMA bytes.
        self.lin_w = lin_w_f32.astype(jnp.bfloat16)
        self.lin_b = 0.01 * jax.random.normal(k_b, (1, text_feat_size), jnp.float32)
        self.ln2_gamma = jnp.ones((1, text_feat_size), jnp.float32)
        self.ln2_beta = jnp.zeros((1, text_feat_size), jnp.float32)

        # Fold LN1 affine into the Linear layer:  W' = diag(g1) @ W,  b' = b + b1 @ W
        w_f32 = self.lin_w.astype(jnp.float32)
        self.w_eff = (self.ln1_gamma[:, None] * w_f32).astype(jnp.bfloat16)
        self.b_eff = (self.lin_b + self.ln1_beta @ w_f32).reshape(1, text_feat_size)

        # text_model.transformer.wte (decoder-only branch) — bf16 to match the
        # adapter output dtype downstream.
        self.wte = (jax.random.normal(k_wte, (vocab_size, text_feat_size),
                                      jnp.float32) * 0.02).astype(jnp.bfloat16)
        if prompt_embedding:
            self.prompt = (jax.random.normal(
                k_prompt, (1, text_feat_size), jnp.float32) * 0.02).astype(jnp.bfloat16)

    # -- features.view(B, C, -1).permute(0, 2, 1); adapter(features) ---------
    def _vision_encoder(self, image_features):
        B, C, H, W = image_features.shape
        assert C == self.image_feat_size
        # Only the free reshape happens here; the permute(0,2,1) is fused into
        # the Pallas kernel (in-kernel transpose), avoiding an extra HBM pass.
        feat_ncs = image_features.reshape(B, C, H * W)
        feats = adapter_pallas(feat_ncs, self.w_eff, self.b_eff,
                               self.ln2_gamma, self.ln2_beta)
        if self.prompt_embedding:
            prompt = jnp.broadcast_to(self.prompt[None, :, :],
                                      (B, 1, self.text_feat_size)).astype(feats.dtype)
            feats = jnp.concatenate((prompt, feats), axis=1)
        return feats

    # -- forward (decoder-only text-model branch) ----------------------------
    def forward(self, image_features, input_ids):
        features = self._vision_encoder(image_features)
        # input_ids[:, :-1] -> wte -> concat with visual features along seq dim
        ids = input_ids[:, :-1]
        inputs_embeds = jnp.take(self.wte, ids, axis=0).astype(features.dtype)
        inputs_embeds = jnp.concatenate((features, inputs_embeds), axis=1)
        # TODO(synk): output = self.text_model(inputs_embeds=inputs_embeds, ...)
        #             — external HF model, not translatable; return the embeds.
        return inputs_embeds


# --------------------------------------------------------------------------- #
# Pure-JAX f32 reference for correctness check (original, unfolded adapter)
# --------------------------------------------------------------------------- #
def _reference(model, image_features, input_ids):
    B, C, H, W = image_features.shape
    x = image_features.reshape(B, C, H * W).transpose(0, 2, 1).astype(jnp.float32)

    def ln(v, g, b):
        mu = v.mean(-1, keepdims=True)
        var = ((v - mu) ** 2).mean(-1, keepdims=True)
        return (v - mu) * jax.lax.rsqrt(var + LN_EPS) * g + b

    h = ln(x, model.ln1_gamma, model.ln1_beta)
    h = jnp.dot(h, model.lin_w.astype(jnp.float32),
                precision=jax.lax.Precision.HIGHEST) + model.lin_b
    h = ln(h, model.ln2_gamma[0], model.ln2_beta[0])
    if model.prompt_embedding:
        h = jnp.concatenate(
            (jnp.broadcast_to(model.prompt[None].astype(jnp.float32),
                              (B, 1, model.text_feat_size)), h), axis=1)
    emb = jnp.take(model.wte, input_ids[:, :-1], axis=0).astype(jnp.float32)
    return jnp.concatenate((h, emb), axis=1)


# --------------------------------------------------------------------------- #
if __name__ == "__main__":
    key = jax.random.PRNGKey(0)
    k_img, k_ids, k_params = jax.random.split(key, 3)

    B, C, H, W = 2, 256, 16, 16      # image_feat_size scaled down from 2048 -> 256
    T = 8                            # text sequence length
    VOCAB, D_TXT = 64, 128           # text_feat_size scaled down from 512 -> 128

    image_features = jax.random.normal(k_img, (B, C, H, W), jnp.float32)
    input_ids = jax.random.randint(k_ids, (B, T), 0, VOCAB, jnp.int32)

    model = ImageToTextPallas(k_params, image_feat_size=C, text_feat_size=D_TXT,
                              vocab_size=VOCAB, prompt_embedding=False)

    out = model.forward(image_features, input_ids)
    out = jax.block_until_ready(out)

    ref = _reference(model, image_features, input_ids)
    S = H * W
    assert out.shape == (B, S + (T - 1), D_TXT), out.shape
    out_f32 = out.astype(jnp.float32)
    max_diff = float(jnp.max(jnp.abs(out_f32 - ref)))
    # Tolerance accounts for the deliberate bf16 MXU-feed / bf16 output policy.
    assert jnp.allclose(out_f32, ref, atol=5e-2, rtol=5e-2), max_diff

    print("KERNEL_OK")
</pallas_src>

<mosaic_0001>
module attributes {stable_mosaic.version = 11 : i64} {
  func.func @_adapter_kernel(%arg0: i32, %arg1: i32, %arg2: memref<1x256x256xf32, #tpu.memory_space<vmem>>, %arg3: memref<256x128xbf16, #tpu.memory_space<vmem>>, %arg4: memref<1x128xf32, #tpu.memory_space<vmem>>, %arg5: memref<1x128xf32, #tpu.memory_space<vmem>>, %arg6: memref<1x128xf32, #tpu.memory_space<vmem>>, %arg7: memref<1x256x128xbf16, #tpu.memory_space<vmem>>) attributes {dimension_semantics = [#tpu.dimension_semantics<parallel>, #tpu.dimension_semantics<parallel>], iteration_bounds = array<i64: 2, 1>, scalar_prefetch = 0 : i64, scratch_operands = 0 : i64, tpu.core_type = #tpu.core_type<tc>, window_params = [{transform_indices = @transform_0, window_bounds = array<i64: 1, 256, 256>}, {pipeline_mode = #tpu.pipeline_mode<synchronous>, transform_indices = @transform_1, window_bounds = array<i64: 256, 128>}, {pipeline_mode = #tpu.pipeline_mode<synchronous>, transform_indices = @transform_2, window_bounds = array<i64: 1, 128>}, {pipeline_mode = #tpu.pipeline_mode<synchronous>, transform_indices = @transform_3, window_bounds = array<i64: 1, 128>}, {pipeline_mode = #tpu.pipeline_mode<synchronous>, transform_indices = @transform_4, window_bounds = array<i64: 1, 128>}, {transform_indices = @transform_5, window_bounds = array<i64: 1, 256, 128>}]} {
    %c0 = arith.constant 0 : index
    %c0_0 = arith.constant 0 : index
    %c0_1 = arith.constant 0 : index
    %0 = vector.load %arg2[%c0, %c0_0, %c0_1] : memref<1x256x256xf32, #tpu.memory_space<vmem>>, vector<1x256x256xf32>
    %1 = vector.shape_cast %0 : vector<1x256x256xf32> to vector<256x256xf32>
    %2 = tpu.transpose %1, [1, 0] : vector<256x256xf32> -> vector<256x256xf32>
    %cst = arith.constant dense<0.000000e+00> : vector<256xf32>
    %3 = vector.multi_reduction <add>, %2, %cst [1] : vector<256x256xf32> to vector<256xf32>
    %4 = vector.shape_cast %3 : vector<256xf32> to vector<256x1xf32>
    %cst_2 = arith.constant 2.560000e+02 : f32
    %5 = vector.broadcast %cst_2 : f32 to vector<256x1xf32>
    %6 = arith.divf %4, %5 : vector<256x1xf32>
    %7 = vector.broadcast %6 : vector<256x1xf32> to vector<256x256xf32>
    %8 = arith.subf %2, %7 : vector<256x256xf32>
    %9 = arith.mulf %8, %8 : vector<256x256xf32>
    %cst_3 = arith.constant dense<0.000000e+00> : vector<256xf32>
    %10 = vector.multi_reduction <add>, %9, %cst_3 [1] : vector<256x256xf32> to vector<256xf32>
    %11 = vector.shape_cast %10 : vector<256xf32> to vector<256x1xf32>
    %cst_4 = arith.constant 2.560000e+02 : f32
    %12 = vector.broadcast %cst_4 : f32 to vector<256x1xf32>
    %13 = arith.divf %11, %12 : vector<256x1xf32>
    %cst_5 = arith.constant 9.99999974E-6 : f32
    %14 = vector.broadcast %cst_5 : f32 to vector<256x1xf32>
    %15 = arith.addf %13, %14 : vector<256x1xf32>
    %16 = math.rsqrt %15 : vector<256x1xf32>
    %17 = vector.broadcast %16 : vector<256x1xf32> to vector<256x256xf32>
    %18 = arith.mulf %8, %17 : vector<256x256xf32>
    %19 = arith.truncf %18 : vector<256x256xf32> to vector<256x256xbf16>
    %c0_6 = arith.constant 0 : index
    %c0_7 = arith.constant 0 : index
    %20 = vector.load %arg3[%c0_6, %c0_7] : memref<256x128xbf16, #tpu.memory_space<vmem>>, vector<256x128xbf16>
    %cst_8 = arith.constant dense<0.000000e+00> : vector<256x128xf32>
    %21 = tpu.matmul %19, %20, %cst_8 {dimension_numbers = #tpu.dot_dimension_numbers<[1], [0], [0], [1], [0, 0, 1, 1], [], []>} : vector<256x256xbf16>, vector<256x128xbf16>, vector<256x128xf32> -> vector<256x128xf32>
    %c0_9 = arith.constant 0 : index
    %c0_10 = arith.constant 0 : index
    %22 = vector.load %arg4[%c0_9, %c0_10] : memref<1x128xf32, #tpu.memory_space<vmem>>, vector<1x128xf32>
    %23 = vector.broadcast %22 : vector<1x128xf32> to vector<256x128xf32>
    %24 = arith.addf %21, %23 : vector<256x128xf32>
    %cst_11 = arith.constant dense<0.000000e+00> : vector<256xf32>
    %25 = vector.multi_reduction <add>, %24, %cst_11 [1] : vector<256x128xf32> to vector<256xf32>
    %26 = vector.shape_cast %25 : vector<256xf32> to vector<256x1xf32>
    %cst_12 = arith.constant 1.280000e+02 : f32
    %27 = vector.broadcast %cst_12 : f32 to vector<256x1xf32>
    %28 = arith.divf %26, %27 : vector<256x1xf32>
    %29 = vector.broadcast %28 : vector<256x1xf32> to vector<256x128xf32>
    %30 = arith.subf %24, %29 : vector<256x128xf32>
    %31 = arith.mulf %30, %30 : vector<256x128xf32>
    %cst_13 = arith.constant dense<0.000000e+00> : vector<256xf32>
    %32 = vector.multi_reduction <add>, %31, %cst_13 [1] : vector<256x128xf32> to vector<256xf32>
    %33 = vector.shape_cast %32 : vector<256xf32> to vector<256x1xf32>
    %cst_14 = arith.constant 1.280000e+02 : f32
    %34 = vector.broadcast %cst_14 : f32 to vector<256x1xf32>
    %35 = arith.divf %33, %34 : vector<256x1xf32>
    %cst_15 = arith.constant 9.99999974E-6 : f32
    %36 = vector.broadcast %cst_15 : f32 to vector<256x1xf32>
    %37 = arith.addf %35, %36 : vector<256x1xf32>
    %38 = math.rsqrt %37 : vector<256x1xf32>
    %39 = vector.broadcast %38 : vector<256x1xf32> to vector<256x128xf32>
    %40 = arith.mulf %30, %39 : vector<256x128xf32>
    %c0_16 = arith.constant 0 : index
    %c0_17 = arith.constant 0 : index
    %41 = vector.load %arg5[%c0_16, %c0_17] : memref<1x128xf32, #tpu.memory_space<vmem>>, vector<1x128xf32>
    %42 = vector.broadcast %41 : vector<1x128xf32> to vector<256x128xf32>
    %43 = arith.mulf %40, %42 : vector<256x128xf32>
    %c0_18 = arith.constant 0 : index
    %c0_19 = arith.constant 0 : index
    %44 = vector.load %arg6[%c0_18, %c0_19] : memref<1x128xf32, #tpu.memory_space<vmem>>, vector<1x128xf32>
    %45 = vector.broadcast %44 : vector<1x128xf32> to vector<256x128xf32>
    %46 = arith.addf %43, %45 : vector<256x128xf32>
    %47 = arith.truncf %46 : vector<256x128xf32> to vector<256x128xbf16>
    %c0_20 = arith.constant 0 : index
    %c0_21 = arith.constant 0 : index
    %c0_22 = arith.constant 0 : index
    %48 = vector.load %arg7[%c0_20, %c0_21, %c0_22] : memref<1x256x128xbf16, #tpu.memory_space<vmem>>, vector<1x256x128xbf16>
    %49 = vector.shape_cast %48 : vector<1x256x128xbf16> to vector<256x128xbf16>
    %50 = vector.shape_cast %47 : vector<256x128xbf16> to vector<1x256x128xbf16>
    tpu.vector_store %arg7[%c0_20, %c0_21, %c0_22], %50 {strides = array<i32>} : memref<1x256x128xbf16, #tpu.memory_space<vmem>>, vector<1x256x128xbf16>,
    return
  }
  func.func @transform_0(%arg0: i32, %arg1: i32) -> (i32, i32, i32) {
    %c0_i32 = arith.constant 0 : i32
    %c0_i32_0 = arith.constant 0 : i32
    return %arg0, %c0_i32, %arg1 : i32, i32, i32
  }
  func.func @transform_1(%arg0: i32, %arg1: i32) -> (i32, i32) {
    %c0_i32 = arith.constant 0 : i32
    %c0_i32_0 = arith.constant 0 : i32
    %c0_i32_1 = arith.constant 0 : i32
    return %c0_i32, %c0_i32_0 : i32, i32
  }
  func.func @transform_2(%arg0: i32, %arg1: i32) -> (i32, i32) {
    %c0_i32 = arith.constant 0 : i32
    %c0_i32_0 = arith.constant 0 : i32
    %c0_i32_1 = arith.constant 0 : i32
    return %c0_i32, %c0_i32_0 : i32, i32
  }
  func.func @transform_3(%arg0: i32, %arg1: i32) -> (i32, i32) {
    %c0_i32 = arith.constant 0 : i32
    %c0_i32_0 = arith.constant 0 : i32
    %c0_i32_1 = arith.constant 0 : i32
    return %c0_i32, %c0_i32_0 : i32, i32
  }
  func.func @transform_4(%arg0: i32, %arg1: i32) -> (i32, i32) {
    %c0_i32 = arith.constant 0 : i32
    %c0_i32_0 = arith.constant 0 : i32
    %c0_i32_1 = arith.constant 0 : i32
    return %c0_i32, %c0_i32_0 : i32, i32
  }
  func.func @transform_5(%arg0: i32, %arg1: i32) -> (i32, i32, i32) {
    %c0_i32 = arith.constant 0 : i32
    %c0_i32_0 = arith.constant 0 : i32
    return %arg0, %arg1, %c0_i32 : i32, i32, i32
  }
}

</mosaic_0001>

<llo_original>
// kernel: adapter_pallas.1
$region0: #{adapter_pallas.1}
  #allocation0 [shape = 'u32[]', space=smem, size = 0x4, offset = 0x4, fixed_abs, tag = 'smem constant byte address 0x4 - core index']
  #allocation1 [shape = 'u32[72,128]{1,0:T(1,128)}', space=vmem, size = 0x9000, scoped, tag = 'internal scratch']
  %s0 = inlined_call_operand.hbm [shape: f32[2,256,256], index: 0, kind: input, shape index: {}]
  %s1 = inlined_call_operand.hbm [shape: bf16[256,128], index: 1, kind: input, shape index: {}]
  %s2 = inlined_call_operand.vmem [shape: f32[1,128], index: 2, kind: input, shape index: {}]
  %s3 = inlined_call_operand.vmem [shape: f32[1,128], index: 3, kind: input, shape index: {}]
  %s4 = inlined_call_operand.vmem [shape: f32[1,128], index: 4, kind: input, shape index: {}]
  %s5 = inlined_call_operand.hbm [shape: bf16[2,256,128], index: 5, kind: output, shape index: {}]
  %s6 = sld [smem:[#allocation0]]
  $region61: #{adapter_pallas.1} parent=0
    _
  %s8 = ssub.s32 1, %s6
  %s9 = scalar_select 0, %s8, %s6
  $region1: #{adapter_pallas.1} parent=0
    #allocation2 [shape = 'u8[524288]{0}', space=vmem, size = 0x80000, scoped, tag = 'input window, operand 0']
    #allocation3 [shape = 's32[2]{0}', space=sflag, size = 0x8, scoped, tag = 'scoped memory for adapter_pallas.1']
    #allocation4 [shape = 's32[2]{0}', space=sflag, size = 0x8, scoped, tag = 'scoped memory for adapter_pallas.1']
    #allocation5 [shape = 'u8[65536]{0}', space=vmem, size = 0x10000, scoped, tag = 'input window, operand 1, single buffered']
    #allocation6 [shape = 's32[1]{0}', space=sflag, size = 0x4, scoped, tag = 'scoped memory for adapter_pallas.1']
    #allocation7 [shape = 'u8[131072]{0}', space=vmem, size = 0x20000, scoped, tag = 'output window, operand 0']
    %10 = vsyncpa [#allocation3], 0
    %s11 = scalar_lea.sflag [#allocation3], 1
    %12 = vsyncpa %s11, 0
    %13 = vsyncpa [#allocation6], 0
    %14 = vsyncpa [#allocation4], 0
    %s15 = scalar_lea.sflag [#allocation4], 1
    %16 = vsyncpa %s15, 0
    loop: start=0, step=1, limit=4
    $region2: #{adapter_pallas.1} parent=1 // loop_pre_header
      _
    $region3: #{adapter_pallas.1} parent=1 // loop_header
      %s18 = sphi 0, %s22
      %p19 = scmp.ge.s32.totalorder %s18, 4
      %s25 = sphi 0, %s37
      %s26 = sphi 0, %s33
      %s27 = sphi 0, %s25
      %s28 = sphi 0, %s26
      %s29 = sphi 0, %s27
      %s30 = sphi 0, %s28
      %s42 = sphi 0, %s44
      %s45 = sphi 0, %s42
      %s46 = sphi 0, %s45
      %s62 = sphi 0, %s46
      %s66 = sphi 0, %s66
      %s68 = sphi 0, %s66
      %s69 = sphi 0, %s68
      %s83 = sphi 0, %s69
      %s87 = sphi 0, %s87
      %s89 = sphi 0, %s87
      %s90 = sphi 0, %s89
      %s104 = sphi 0, %s90
      %s108 = sphi 0, %s108
      %s110 = sphi 0, %s108
      %s111 = sphi 0, %s110
      %s125 = sphi 0, %s111
      %s129 = sphi 0, %s129
      %s131 = sphi 0, %s129
      %s132 = sphi 0, %s131
      %s146 = sphi 0, %s132
      %s154 = sphi 0, %s156
      %s157 = sphi 0, %s154
      %s158 = sphi 0, %s157
      %s174 = sphi 0, %s158
    $region4: #{adapter_pallas.1} parent=1 // loop_header_branch
      %21 = sbr.rel (%p19) target = $region8
    $region5: #{adapter_pallas.1} parent=1 // loop_body
      %s23 = ssub.s32 %s18, 1
      %s24 = ssub.s32 %s18, 2
      %s31 = sadd.s32 1, %s26
      %p32 = scmp.ge.s32.totalorder %s31, 1
      %s33 = scalar_select %p32, 0, %s31
      %s34 = sadd.s32 1, %s25
      %s35 = scalar_select %p32, %s34, %s25
      %p36 = scmp.ge.s32.totalorder %s35, 2
      %s37 = scalar_select %p36, 0, %s35
      %s38 = ssub.s32 %s25, %s37
      %s39 = ssub.s32 %s26, %s33
      %s40 = sor.u32 %s38, %s39
      %p41 = scmp.eq.s32.totalorder %s40, 0
      %s43 = sadd.s32 %s42, 1
      %s44 = scalar_select %p41, %s42, %s43
      %p47 = pneg %p41
      %p48 = scmp.eq.s32.totalorder %s18, 1
      %p49 = por %p47, %p48
      %p50 = scmp.ne.s32.totalorder %s42, %s45
      %p51 = scmp.eq.s32.totalorder %s18, 0
      %p52 = por %p50, %p51
      %p53 = scmp.ne.s32.totalorder %s42, %s45
      %p54 = scmp.eq.s32.totalorder %s23, 1
      %p55 = por %p53, %p54
      %p56 = scmp.ne.s32.totalorder %s45, %s46
      %p57 = scmp.eq.s32.totalorder %s23, 0
      %p58 = por %p56, %p57
      %p59 = scmp.ne.s32.totalorder %s45, %s46
      %p60 = scmp.eq.s32.totalorder %s24, 1
      %p61 = por %p59, %p60
      %p63 = scmp.ne.s32.totalorder %s46, %s62
      %p64 = scmp.eq.s32.totalorder %s24, 0
      %p65 = por %p63, %p64
      %s67 = sadd.s32 %s66, 1
      %p70 = scmp.eq.s32.totalorder %s18, 1
      %p71 = scmp.ne.s32.totalorder %s66, %s68
      %p72 = scmp.eq.s32.totalorder %s18, 0
      %p73 = por %p71, %p72
      %p74 = scmp.ne.s32.totalorder %s66, %s68
      %p75 = scmp.eq.s32.totalorder %s23, 1
      %p76 = por %p74, %p75
      %p77 = scmp.ne.s32.totalorder %s68, %s69
      %p78 = scmp.eq.s32.totalorder %s23, 0
      %p79 = por %p77, %p78
      %p80 = scmp.ne.s32.totalorder %s68, %s69
      %p81 = scmp.eq.s32.totalorder %s24, 1
      %p82 = por %p80, %p81
      %p84 = scmp.ne.s32.totalorder %s69, %s83
      %p85 = scmp.eq.s32.totalorder %s24, 0
      %p86 = por %p84, %p85
      %s88 = sadd.s32 %s87, 1
      %p91 = scmp.eq.s32.totalorder %s18, 1
      %p92 = scmp.ne.s32.totalorder %s87, %s89
      %p93 = scmp.eq.s32.totalorder %s18, 0
      %p94 = por %p92, %p93
      %p95 = scmp.ne.s32.totalorder %s87, %s89
      %p96 = scmp.eq.s32.totalorder %s23, 1
      %p97 = por %p95, %p96
      %p98 = scmp.ne.s32.totalorder %s89, %s90
      %p99 = scmp.eq.s32.totalorder %s23, 0
      %p100 = por %p98, %p99
      %p101 = scmp.ne.s32.totalorder %s89, %s90
      %p102 = scmp.eq.s32.totalorder %s24, 1
      %p103 = por %p101, %p102
      %p105 = scmp.ne.s32.totalorder %s90, %s104
      %p106 = scmp.eq.s32.totalorder %s24, 0
      %p107 = por %p105, %p106
      %s109 = sadd.s32 %s108, 1
      %p112 = scmp.eq.s32.totalorder %s18, 1
      %p113 = scmp.ne.s32.totalorder %s108, %s110
      %p114 = scmp.eq.s32.totalorder %s18, 0
      %p115 = por %p113, %p114
      %p116 = scmp.ne.s32.totalorder %s108, %s110
      %p117 = scmp.eq.s32.totalorder %s23, 1
      %p118 = por %p116, %p117
      %p119 = scmp.ne.s32.totalorder %s110, %s111
      %p120 = scmp.eq.s32.totalorder %s23, 0
      %p121 = por %p119, %p120
      %p122 = scmp.ne.s32.totalorder %s110, %s111
      %p123 = scmp.eq.s32.totalorder %s24, 1
      %p124 = por %p122, %p123
      %p126 = scmp.ne.s32.totalorder %s111, %s125
      %p127 = scmp.eq.s32.totalorder %s24, 0
      %p128 = por %p126, %p127
      %s130 = sadd.s32 %s129, 1
      %p133 = scmp.eq.s32.totalorder %s18, 1
      %p134 = scmp.ne.s32.totalorder %s129, %s131
      %p135 = scmp.eq.s32.totalorder %s18, 0
      %p136 = por %p134, %p135
      %p137 = scmp.ne.s32.totalorder %s129, %s131
      %p138 = scmp.eq.s32.totalorder %s23, 1
      %p139 = por %p137, %p138
      %p140 = scmp.ne.s32.totalorder %s131, %s132
      %p141 = scmp.eq.s32.totalorder %s23, 0
      %p142 = por %p140, %p141
      %p143 = scmp.ne.s32.totalorder %s131, %s132
      %p144 = scmp.eq.s32.totalorder %s24, 1
      %p145 = por %p143, %p144
      %p147 = scmp.ne.s32.totalorder %s132, %s146
      %p148 = scmp.eq.s32.totalorder %s24, 0
      %p149 = por %p147, %p148
      %s150 = ssub.s32 %s25, %s37
      %s151 = ssub.s32 %s26, %s33
      %s152 = sor.u32 %s150, %s151
      %p153 = scmp.eq.s32.totalorder %s152, 0
      %s155 = sadd.s32 %s154, 1
      %s156 = scalar_select %p153, %s154, %s155
      %p159 = pneg %p153
      %p160 = scmp.eq.s32.totalorder %s18, 1
      %p161 = por %p159, %p160
      %p162 = scmp.ne.s32.totalorder %s154, %s157
      %p163 = scmp.eq.s32.totalorder %s18, 0
      %p164 = por %p162, %p163
      %p165 = scmp.ne.s32.totalorder %s154, %s157
      %p166 = scmp.eq.s32.totalorder %s23, 1
      %p167 = por %p165, %p166
      %p168 = scmp.ne.s32.totalorder %s157, %s158
      %p169 = scmp.eq.s32.totalorder %s23, 0
      %p170 = por %p168, %p169
      %p171 = scmp.ne.s32.totalorder %s157, %s158
      %p172 = scmp.eq.s32.totalorder %s24, 1
      %p173 = por %p171, %p172
      %p175 = scmp.ne.s32.totalorder %s158, %s174
      %p176 = scmp.eq.s32.totalorder %s24, 0
      %p177 = por %p175, %p176
      %p178 = scmp.le.s32.totalorder 1, %s18
      %p179 = scmp.lt.s32.totalorder %s18, 3
      %p180 = pnand %p178, %p179
      %p181 = pneg %p180
      // Predicated region
      $region9: #{adapter_pallas.1} parent=5 // pred_check
        _
      $region10: #{adapter_pallas.1} parent=5 // pred_check_branch
        %183 = sbr.rel (%p180) target = $region12
      $region11: #{adapter_pallas.1} parent=5 // pred_region
        %s184 = ssub.s32 %s18, 1
        // Predicated region
        $region13: #{adapter_pallas.1} parent=11 // pred_check
          %p185 = pneg %p79
        $region14: #{adapter_pallas.1} parent=11 // pred_check_branch
          %187 = sbr.rel (%p185) target = $region16
        $region15: #{adapter_pallas.1} parent=11 // pred_region
          %189 = vsyncadd [#allocation6], 0
          %s190 = sshll.u32 %s1, 4
          %s191 = int_to_ptr.hbm [resolvable:$true] %s190
          %s192 = sshll.u32 [#allocation5], 4
          %s193 = int_to_ptr.vmem [resolvable:$true] %s192
          %198 = dma.hbm_to_vmem [thread:$0]  %s191, 2048, %s193, [#allocation6], 64, 64, 4
        $region16: #{adapter_pallas.1} parent=11 // pred_fallthru
          _
        // Predicated region
        $region17: #{adapter_pallas.1} parent=11 // pred_check
          %p199 = pneg %p100
        $region18: #{adapter_pallas.1} parent=11 // pred_check_branch
          %201 = sbr.rel (%p199) target = $region20
        $region19: #{adapter_pallas.1} parent=11 // pred_region
          _
        $region20: #{adapter_pallas.1} parent=11 // pred_fallthru
          _
        // Predicated region
        $region21: #{adapter_pallas.1} parent=11 // pred_check
          %p202 = pneg %p121
        $region22: #{adapter_pallas.1} parent=11 // pred_check_branch
          %204 = sbr.rel (%p202) target = $region24
        $region23: #{adapter_pallas.1} parent=11 // pred_region
          _
        $region24: #{adapter_pallas.1} parent=11 // pred_fallthru
          _
        // Predicated region
        $region25: #{adapter_pallas.1} parent=11 // pred_check
          %p205 = pneg %p142
        $region26: #{adapter_pallas.1} parent=11 // pred_check_branch
          %207 = sbr.rel (%p205) target = $region28
        $region27: #{adapter_pallas.1} parent=11 // pred_region
          _
        $region28: #{adapter_pallas.1} parent=11 // pred_fallthru
          _
      $region12: #{adapter_pallas.1} parent=5 // pred_fallthru
        _
      %p208 = scmp.lt.s32.totalorder %s18, 2
      // Predicated region
      $region29: #{adapter_pallas.1} parent=5 // pred_check
        %p209 = pneg %p208
      $region30: #{adapter_pallas.1} parent=5 // pred_check_branch
        %211 = sbr.rel (%p209) target = $region32
      $region31: #{adapter_pallas.1} parent=5 // pred_region
        // Predicated region
        $region33: #{adapter_pallas.1} parent=31 // pred_check
          %p212 = pneg %p52
        $region34: #{adapter_pallas.1} parent=31 // pred_check_branch
          %214 = sbr.rel (%p212) target = $region36
        $region35: #{adapter_pallas.1} parent=31 // pred_region
          %s215 = sand.u32 %s42, 1
          %s216 = scalar_lea.sflag [#allocation3], %s215
          %s217 = sand.u32 %s42, 1
          %s218 = smul.addr %s217, 512
          %s219 = scalar_lea.vmem [#allocation2], %s218
          %s220 = smul.u32 2, %s26
          %222 = vsyncadd %s216, 0
          %s223 = smul.addr %s25, 64
          %s224 = sadd.s32 %s220, %s223
          %s225 = smul.addr %s224, 8
          %s226 = scalar_lea.hbm %s0, %s225
          %s227 = sshll.u32 %s226, 4
          %s228 = int_to_ptr.hbm [resolvable:$true] %s227
          %s229 = sshll.u32 %s219, 4
          %s230 = int_to_ptr.vmem [resolvable:$true] %s229
          %235 = dma.hbm_to_vmem [thread:$0]  %s228, 8192, %s230, %s216, 256, 256, 16
        $region36: #{adapter_pallas.1} parent=31 // pred_fallthru
          _
      $region32: #{adapter_pallas.1} parent=5 // pred_fallthru
        _
      %p236 = scmp.le.s32.totalorder 1, %s18
      %p237 = scmp.lt.s32.totalorder %s18, 3
      %p238 = pnand %p236, %p237
      %p239 = pneg %p238
      // Predicated region
      $region37: #{adapter_pallas.1} parent=5 // pred_check
        _
      $region38: #{adapter_pallas.1} parent=5 // pred_check_branch
        %241 = sbr.rel (%p238) target = $region40
      $region39: #{adapter_pallas.1} parent=5 // pred_region
        %s242 = ssub.s32 %s18, 1
        %s243 = sand.u32 %s45, 1
        %s244 = scalar_lea.sflag [#allocation3], %s243
        %s245 = sand.u32 %s45, 1
        %s246 = smul.addr %s245, 512
        %s247 = scalar_lea.vmem [#allocation2], %s246
        // Predicated region
        $region41: #{adapter_pallas.1} parent=39 // pred_check
          %p248 = pneg %p58
        $region42: #{adapter_pallas.1} parent=39 // pred_check_branch
          %250 = sbr.rel (%p248) target = $region44
        $region43: #{adapter_pallas.1} parent=39 // pred_region
          %252 = dma.done %s244, 8192
        $region44: #{adapter_pallas.1} parent=39 // pred_fallthru
          _
        // Predicated region
        $region45: #{adapter_pallas.1} parent=39 // pred_check
          %p253 = pneg %p79
        $region46: #{adapter_pallas.1} parent=39 // pred_check_branch
          %255 = sbr.rel (%p253) target = $region48
        $region47: #{adapter_pallas.1} parent=39 // pred_region
          %257 = dma.done [#allocation6], 2048
        $region48: #{adapter_pallas.1} parent=39 // pred_fallthru
          _
        %s258 = sand.u32 %s45, 1
        %s259 = scalar_lea.sflag [#allocation3], %s258
        %s260 = sand.u32 %s45, 1
        %s261 = smul.addr %s260, 512
        %s262 = scalar_lea.vmem [#allocation2], %s261
        %p263 = pneg %p58
        %p264 = pneg %p55
        %p265 = pneg %p79
        %p266 = pneg %p76
        %p267 = pneg %p100
        %p268 = pneg %p97
        %p269 = pneg %p121
        %p270 = pneg %p118
        %p271 = pneg %p142
        %p272 = pneg %p139
        %p273 = pneg %p170
        %p274 = pneg %p167
        %s275 = sand.u32 %s157, 1
        %s276 = scalar_lea.sflag [#allocation4], %s275
        %s277 = sand.u32 %s157, 1
        %s278 = smul.addr %s277, 128
        %s279 = scalar_lea.vmem [#allocation7], %s278
        %s280 = smul.u32 2, %s28
        %s281 = smul.u32 32, %s28
        %v282 = vld [vmem:[%s247] sm:$0xff]
        %v283 = vld [vmem:[%s247 + $0x8] sm:$0xff]
        %v284 = vld [vmem:[%s247 + $0x10] sm:$0xff]
        %v285 = vld [vmem:[%s247 + $0x18] sm:$0xff]
        %v286 = vld [vmem:[%s247 + $0x20] sm:$0xff]
        %v287 = vld [vmem:[%s247 + $0x28] sm:$0xff]
        %v288 = vld [vmem:[%s247 + $0x30] sm:$0xff]
        %v289 = vld [vmem:[%s247 + $0x38] sm:$0xff]
        %v290 = vld [vmem:[%s247 + $0x40] sm:$0xff]
        %v291 = vld [vmem:[%s247 + $0x48] sm:$0xff]
        %v292 = vld [vmem:[%s247 + $0x50] sm:$0xff]
        %v293 = vld [vmem:[%s247 + $0x58] sm:$0xff]
        %v294 = vld [vmem:[%s247 + $0x60] sm:$0xff]
        %v295 = vld [vmem:[%s247 + $0x68] sm:$0xff]
        %v296 = vld [vmem:[%s247 + $0x70] sm:$0xff]
        %v297 = vld [vmem:[%s247 + $0x78] sm:$0xff]
        %v298 = vld [vmem:[%s247 + $0x80] sm:$0xff]
        %v299 = vld [vmem:[%s247 + $0x88] sm:$0xff]
        %v300 = vld [vmem:[%s247 + $0x90] sm:$0xff]
        %v301 = vld [vmem:[%s247 + $0x98] sm:$0xff]
        %v302 = vld [vmem:[%s247 + $0xa0] sm:$0xff]
        %v303 = vld [vmem:[%s247 + $0xa8] sm:$0xff]
        %v304 = vld [vmem:[%s247 + $0xb0] sm:$0xff]
        %v305 = vld [vmem:[%s247 + $0xb8] sm:$0xff]
        %v306 = vld [vmem:[%s247 + $0xc0] sm:$0xff]
        %v307 = vld [vmem:[%s247 + $0xc8] sm:$0xff]
        %v308 = vld [vmem:[%s247 + $0xd0] sm:$0xff]
        %v309 = vld [vmem:[%s247 + $0xd8] sm:$0xff]
        %v310 = vld [vmem:[%s247 + $0xe0] sm:$0xff]
        %v311 = vld [vmem:[%s247 + $0xe8] sm:$0xff]
        %v312 = vld [vmem:[%s247 + $0xf0] sm:$0xff]
        %v313 = vld [vmem:[%s247 + $0xf8] sm:$0xff]
        %v314 = vld [vmem:[%s247 + $0x100] sm:$0xff]
        %v315 = vld [vmem:[%s247 + $0x108] sm:$0xff]
        %v316 = vld [vmem:[%s247 + $0x110] sm:$0xff]
        %v317 = vld [vmem:[%s247 + $0x118] sm:$0xff]
        %v318 = vld [vmem:[%s247 + $0x120] sm:$0xff]
        %v319 = vld [vmem:[%s247 + $0x128] sm:$0xff]
        %v320 = vld [vmem:[%s247 + $0x130] sm:$0xff]
        %v321 = vld [vmem:[%s247 + $0x138] sm:$0xff]
        %v322 = vld [vmem:[%s247 + $0x140] sm:$0xff]
        %v323 = vld [vmem:[%s247 + $0x148] sm:$0xff]
        %v324 = vld [vmem:[%s247 + $0x150] sm:$0xff]
        %v325 = vld [vmem:[%s247 + $0x158] sm:$0xff]
        %v326 = vld [vmem:[%s247 + $0x160] sm:$0xff]
        %v327 = vld [vmem:[%s247 + $0x168] sm:$0xff]
        %v328 = vld [vmem:[%s247 + $0x170] sm:$0xff]
        %v329 = vld [vmem:[%s247 + $0x178] sm:$0xff]
        %v330 = vld [vmem:[%s247 + $0x180] sm:$0xff]
        %v331 = vld [vmem:[%s247 + $0x188] sm:$0xff]
        %v332 = vld [vmem:[%s247 + $0x190] sm:$0xff]
        %v333 = vld [vmem:[%s247 + $0x198] sm:$0xff]
        %v334 = vld [vmem:[%s247 + $0x1a0] sm:$0xff]
        %v335 = vld [vmem:[%s247 + $0x1a8] sm:$0xff]
        %v336 = vld [vmem:[%s247 + $0x1b0] sm:$0xff]
        %v337 = vld [vmem:[%s247 + $0x1b8] sm:$0xff]
        %v338 = vld [vmem:[%s247 + $0x1c0] sm:$0xff]
        %v339 = vld [vmem:[%s247 + $0x1c8] sm:$0xff]
        %v340 = vld [vmem:[%s247 + $0x1d0] sm:$0xff]
        %v341 = vld [vmem:[%s247 + $0x1d8] sm:$0xff]
        %v342 = vld [vmem:[%s247 + $0x1e0] sm:$0xff]
        %v343 = vld [vmem:[%s247 + $0x1e8] sm:$0xff]
        %v344 = vld [vmem:[%s247 + $0x1f0] sm:$0xff]
        %v345 = vld [vmem:[%s247 + $0x1f8] sm:$0xff]
        %346 = vxpose.xlu0.b32.start [1/16] %v282, 128
        %347 = vxpose.xlu0.b32.cont [2/16] %v284, 128
        %348 = vxpose.xlu0.b32.cont [3/16] %v286, 128
        %349 = vxpose.xlu0.b32.cont [4/16] %v288, 128
        %350 = vxpose.xlu0.b32.cont [5/16] %v290, 128
        %351 = vxpose.xlu0.b32.cont [6/16] %v292, 128
        %352 = vxpose.xlu0.b32.cont [7/16] %v294, 128
        %353 = vxpose.xlu0.b32.cont [8/16] %v296, 128
        %354 = vxpose.xlu0.b32.cont [9/16] %v298, 128
        %355 = vxpose.xlu0.b32.cont [10/16] %v300, 128
        %356 = vxpose.xlu0.b32.cont [11/16] %v302, 128
        %357 = vxpose.xlu0.b32.cont [12/16] %v304, 128
        %358 = vxpose.xlu0.b32.cont [13/16] %v306, 128
        %359 = vxpose.xlu0.b32.cont [14/16] %v308, 128
        %360 = vxpose.xlu0.b32.cont [15/16] %v310, 128
        %361 = vxpose.xlu0.b32.end [16/16] %v312, 128
        %v362 = vpop.trf.xlu0
        %v363 = vpop.trf.xlu0
        %v364 = vpop.trf.xlu0
        %v365 = vpop.trf.xlu0
        %v366 = vpop.trf.xlu0
        %v367 = vpop.trf.xlu0
        %v368 = vpop.trf.xlu0
        %v369 = vpop.trf.xlu0
        %v370 = vpop.trf.xlu0
        %v371 = vpop.trf.xlu0
        %v372 = vpop.trf.xlu0
        %v373 = vpop.trf.xlu0
        %v374 = vpop.trf.xlu0
        %v375 = vpop.trf.xlu0
        %v376 = vpop.trf.xlu0
        %v377 = vpop.trf.xlu0
        %378 = vxpose.xlu0.b32.start [1/16] %v283, 128
        %379 = vxpose.xlu0.b32.cont [2/16] %v285, 128
        %380 = vxpose.xlu0.b32.cont [3/16] %v287, 128
        %381 = vxpose.xlu0.b32.cont [4/16] %v289, 128
        %382 = vxpose.xlu0.b32.cont [5/16] %v291, 128
        %383 = vxpose.xlu0.b32.cont [6/16] %v293, 128
        %384 = vxpose.xlu0.b32.cont [7/16] %v295, 128
        %385 = vxpose.xlu0.b32.cont [8/16] %v297, 128
        %386 = vxpose.xlu0.b32.cont [9/16] %v299, 128
        %387 = vxpose.xlu0.b32.cont [10/16] %v301, 128
        %388 = vxpose.xlu0.b32.cont [11/16] %v303, 128
        %389 = vxpose.xlu0.b32.cont [12/16] %v305, 128
        %390 = vxpose.xlu0.b32.cont [13/16] %v307, 128
        %391 = vxpose.xlu0.b32.cont [14/16] %v309, 128
        %392 = vxpose.xlu0.b32.cont [15/16] %v311, 128
        %393 = vxpose.xlu0.b32.end [16/16] %v313, 128
        %v394 = vpop.trf.xlu0
        %v395 = vpop.trf.xlu0
        %v396 = vpop.trf.xlu0
        %v397 = vpop.trf.xlu0
        %v398 = vpop.trf.xlu0
        %v399 = vpop.trf.xlu0
        %v400 = vpop.trf.xlu0
        %v401 = vpop.trf.xlu0
        %v402 = vpop.trf.xlu0
        %v403 = vpop.trf.xlu0
        %v404 = vpop.trf.xlu0
        %v405 = vpop.trf.xlu0
        %v406 = vpop.trf.xlu0
        %v407 = vpop.trf.xlu0
        %v408 = vpop.trf.xlu0
        %v409 = vpop.trf.xlu0
        %410 = vxpose.xlu0.b32.start [1/16] %v314, 128
        %411 = vxpose.xlu0.b32.cont [2/16] %v316, 128
        %412 = vxpose.xlu0.b32.cont [3/16] %v318, 128
        %413 = vxpose.xlu0.b32.cont [4/16] %v320, 128
        %414 = vxpose.xlu0.b32.cont [5/16] %v322, 128
        %415 = vxpose.xlu0.b32.cont [6/16] %v324, 128
        %416 = vxpose.xlu0.b32.cont [7/16] %v326, 128
        %417 = vxpose.xlu0.b32.cont [8/16] %v328, 128
        %418 = vxpose.xlu0.b32.cont [9/16] %v330, 128
        %419 = vxpose.xlu0.b32.cont [10/16] %v332, 128
        %420 = vxpose.xlu0.b32.cont [11/16] %v334, 128
        %421 = vxpose.xlu0.b32.cont [12/16] %v336, 128
        %422 = vxpose.xlu0.b32.cont [13/16] %v338, 128
        %423 = vxpose.xlu0.b32.cont [14/16] %v340, 128
        %424 = vxpose.xlu0.b32.cont [15/16] %v342, 128
        %425 = vxpose.xlu0.b32.end [16/16] %v344, 128
        %v426 = vpop.trf.xlu0
        %v427 = vpop.trf.xlu0
        %v428 = vpop.trf.xlu0
        %v429 = vpop.trf.xlu0
        %v430 = vpop.trf.xlu0
        %v431 = vpop.trf.xlu0
        %v432 = vpop.trf.xlu0
        %v433 = vpop.trf.xlu0
        %v434 = vpop.trf.xlu0
        %v435 = vpop.trf.xlu0
        %v436 = vpop.trf.xlu0
        %v437 = vpop.trf.xlu0
        %v438 = vpop.trf.xlu0
        %v439 = vpop.trf.xlu0
        %v440 = vpop.trf.xlu0
        %v441 = vpop.trf.xlu0
        %442 = vxpose.xlu0.b32.start [1/16] %v315, 128
        %443 = vxpose.xlu0.b32.cont [2/16] %v317, 128
        %444 = vxpose.xlu0.b32.cont [3/16] %v319, 128
        %445 = vxpose.xlu0.b32.cont [4/16] %v321, 128
        %446 = vxpose.xlu0.b32.cont [5/16] %v323, 128
        %447 = vxpose.xlu0.b32.cont [6/16] %v325, 128
        %448 = vxpose.xlu0.b32.cont [7/16] %v327, 128
        %449 = vxpose.xlu0.b32.cont [8/16] %v329, 128
        %450 = vxpose.xlu0.b32.cont [9/16] %v331, 128
        %451 = vxpose.xlu0.b32.cont [10/16] %v333, 128
        %452 = vxpose.xlu0.b32.cont [11/16] %v335, 128
        %453 = vxpose.xlu0.b32.cont [12/16] %v337, 128
        %454 = vxpose.xlu0.b32.cont [13/16] %v339, 128
        %455 = vxpose.xlu0.b32.cont [14/16] %v341, 128
        %456 = vxpose.xlu0.b32.cont [15/16] %v343, 128
        %457 = vxpose.xlu0.b32.end [16/16] %v345, 128
        %v458 = vpop.trf.xlu0
        %v459 = vpop.trf.xlu0
        %v460 = vpop.trf.xlu0
        %v461 = vpop.trf.xlu0
        %v462 = vpop.trf.xlu0
        %v463 = vpop.trf.xlu0
        %v464 = vpop.trf.xlu0
        %v465 = vpop.trf.xlu0
        %v466 = vpop.trf.xlu0
        %v467 = vpop.trf.xlu0
        %v468 = vpop.trf.xlu0
        %v469 = vpop.trf.xlu0
        %v470 = vpop.trf.xlu0
        %v471 = vpop.trf.xlu0
        %v472 = vpop.trf.xlu0
        %v473 = vpop.trf.xlu0
        %v474 = vadd.f32 %v362, %v426
        %475 = vadd.xlane.f32.xlu0 %v474
        %v476 = vpop.xlane.xlu0 %475
        %v477 = vadd.f32 %v363, %v427
        %478 = vadd.xlane.f32.xlu0 %v477
        %v479 = vpop.xlane.xlu0 %478
        %v480 = vadd.f32 %v364, %v428
        %481 = vadd.xlane.f32.xlu0 %v480
        %v482 = vpop.xlane.xlu0 %481
        %v483 = vadd.f32 %v365, %v429
        %484 = vadd.xlane.f32.xlu0 %v483
        %v485 = vpop.xlane.xlu0 %484
        %v486 = vadd.f32 %v366, %v430
        %487 = vadd.xlane.f32.xlu0 %v486
        %v488 = vpop.xlane.xlu0 %487
        %v489 = vadd.f32 %v367, %v431
        %490 = vadd.xlane.f32.xlu0 %v489
        %v491 = vpop.xlane.xlu0 %490
        %v492 = vadd.f32 %v368, %v432
        %493 = vadd.xlane.f32.xlu0 %v492
        %v494 = vpop.xlane.xlu0 %493
        %v495 = vadd.f32 %v369, %v433
        %496 = vadd.xlane.f32.xlu0 %v495
        %v497 = vpop.xlane.xlu0 %496
        %v498 = vadd.f32 %v370, %v434
        %499 = vadd.xlane.f32.xlu0 %v498
        %v500 = vpop.xlane.xlu0 %499
        %v501 = vadd.f32 %v371, %v435
        %502 = vadd.xlane.f32.xlu0 %v501
        %v503 = vpop.xlane.xlu0 %502
        %v504 = vadd.f32 %v372, %v436
        %505 = vadd.xlane.f32.xlu0 %v504
        %v506 = vpop.xlane.xlu0 %505
        %v507 = vadd.f32 %v373, %v437
        %508 = vadd.xlane.f32.xlu0 %v507
        %v509 = vpop.xlane.xlu0 %508
        %v510 = vadd.f32 %v374, %v438
        %511 = vadd.xlane.f32.xlu0 %v510
        %v512 = vpop.xlane.xlu0 %511
        %v513 = vadd.f32 %v375, %v439
        %514 = vadd.xlane.f32.xlu0 %v513
        %v515 = vpop.xlane.xlu0 %514
        %v516 = vadd.f32 %v376, %v440
        %517 = vadd.xlane.f32.xlu0 %v516
        %v518 = vpop.xlane.xlu0 %517
        %v519 = vadd.f32 %v377, %v441
        %520 = vadd.xlane.f32.xlu0 %v519
        %v521 = vpop.xlane.xlu0 %520
        %v522 = vadd.f32 %v394, %v458
        %523 = vadd.xlane.f32.xlu0 %v522
        %v524 = vpop.xlane.xlu0 %523
        %v525 = vadd.f32 %v395, %v459
        %526 = vadd.xlane.f32.xlu0 %v525
        %v527 = vpop.xlane.xlu0 %526
        %v528 = vadd.f32 %v396, %v460
        %529 = vadd.xlane.f32.xlu0 %v528
        %v530 = vpop.xlane.xlu0 %529
        %v531 = vadd.f32 %v397, %v461
        %532 = vadd.xlane.f32.xlu0 %v531
        %v533 = vpop.xlane.xlu0 %532
        %v534 = vadd.f32 %v398, %v462
        %535 = vadd.xlane.f32.xlu0 %v534
        %v536 = vpop.xlane.xlu0 %535
        %v537 = vadd.f32 %v399, %v463
        %538 = vadd.xlane.f32.xlu0 %v537
        %v539 = vpop.xlane.xlu0 %538
        %v540 = vadd.f32 %v400, %v464
        %541 = vadd.xlane.f32.xlu0 %v540
        %v542 = vpop.xlane.xlu0 %541
        %v543 = vadd.f32 %v401, %v465
        %544 = vadd.xlane.f32.xlu0 %v543
        %v545 = vpop.xlane.xlu0 %544
        %v546 = vadd.f32 %v402, %v466
        %547 = vadd.xlane.f32.xlu0 %v546
        %v548 = vpop.xlane.xlu0 %547
        %v549 = vadd.f32 %v403, %v467
        %550 = vadd.xlane.f32.xlu0 %v549
        %v551 = vpop.xlane.xlu0 %550
        %v552 = vadd.f32 %v404, %v468
        %553 = vadd.xlane.f32.xlu0 %v552
        %v554 = vpop.xlane.xlu0 %553
        %v555 = vadd.f32 %v405, %v469
        %556 = vadd.xlane.f32.xlu0 %v555
        %v557 = vpop.xlane.xlu0 %556
        %v558 = vadd.f32 %v406, %v470
        %559 = vadd.xlane.f32.xlu0 %v558
        %v560 = vpop.xlane.xlu0 %559
        %v561 = vadd.f32 %v407, %v471
        %562 = vadd.xlane.f32.xlu0 %v561
        %v563 = vpop.xlane.xlu0 %562
        %v564 = vadd.f32 %v408, %v472
        %565 = vadd.xlane.f32.xlu0 %v564
        %v566 = vpop.xlane.xlu0 %565
        %v567 = vadd.f32 %v409, %v473
        %568 = vadd.xlane.f32.xlu0 %v567
        %v569 = vpop.xlane.xlu0 %568
        %v570 = vrcp.pop 256.0
        %v571 = vmul.f32 256.0, %v570
        %v572 = vsub.f32 1.0, %v571
        %v573 = vmul.f32 %v570, %v572
        %v574 = vadd.f32 %v570, %v573
        %vm575 = vweird.f32 %v570
        %v576 = vsel %vm575, %v570, %v574
        %v577 = vmul.f32 %v476, %v576
        %v578 = vmul.f32 %v479, %v576
        %v579 = vmul.f32 %v482, %v576
        %v580 = vmul.f32 %v485, %v576
        %v581 = vmul.f32 %v488, %v576
        %v582 = vmul.f32 %v491, %v576
        %v583 = vmul.f32 %v494, %v576
        %v584 = vmul.f32 %v497, %v576
        %v585 = vmul.f32 %v500, %v576
        %v586 = vmul.f32 %v503, %v576
        %v587 = vmul.f32 %v506, %v576
        %v588 = vmul.f32 %v509, %v576
        %v589 = vmul.f32 %v512, %v576
        %v590 = vmul.f32 %v515, %v576
        %v591 = vmul.f32 %v518, %v576
        %v592 = vmul.f32 %v521, %v576
        %v593 = vmul.f32 %v524, %v576
        %v594 = vmul.f32 %v527, %v576
        %v595 = vmul.f32 %v530, %v576
        %v596 = vmul.f32 %v533, %v576
        %v597 = vmul.f32 %v536, %v576
        %v598 = vmul.f32 %v539, %v576
        %v599 = vmul.f32 %v542, %v576
        %v600 = vmul.f32 %v545, %v576
        %v601 = vmul.f32 %v548, %v576
        %v602 = vmul.f32 %v551, %v576
        %v603 = vmul.f32 %v554, %v576
        %v604 = vmul.f32 %v557, %v576
        %v605 = vmul.f32 %v560, %v576
        %v606 = vmul.f32 %v563, %v576
        %v607 = vmul.f32 %v566, %v576
        %v608 = vmul.f32 %v569, %v576
        %v609 = vsub.f32 %v362, %v577
        %v610 = vsub.f32 %v426, %v577
        %v611 = vsub.f32 %v363, %v578
        %v612 = vsub.f32 %v427, %v578
        %v613 = vsub.f32 %v364, %v579
        %v614 = vsub.f32 %v428, %v579
        %v615 = vsub.f32 %v365, %v580
        %v616 = vsub.f32 %v429, %v580
        %v617 = vsub.f32 %v366, %v581
        %v618 = vsub.f32 %v430, %v581
        %v619 = vsub.f32 %v367, %v582
        %v620 = vsub.f32 %v431, %v582
        %v621 = vsub.f32 %v368, %v583
        %v622 = vsub.f32 %v432, %v583
        %v623 = vsub.f32 %v369, %v584
        %v624 = vsub.f32 %v433, %v584
        %v625 = vsub.f32 %v370, %v585
        %v626 = vsub.f32 %v434, %v585
        %v627 = vsub.f32 %v371, %v586
        %v628 = vsub.f32 %v435, %v586
        %v629 = vsub.f32 %v372, %v587
        %v630 = vsub.f32 %v436, %v587
        %v631 = vsub.f32 %v373, %v588
        %v632 = vsub.f32 %v437, %v588
        %v633 = vsub.f32 %v374, %v589
        %v634 = vsub.f32 %v438, %v589
        %v635 = vsub.f32 %v375, %v590
        %v636 = vsub.f32 %v439, %v590
        %v637 = vsub.f32 %v376, %v591
        %v638 = vsub.f32 %v440, %v591
        %v639 = vsub.f32 %v377, %v592
        %v640 = vsub.f32 %v441, %v592
        %v641 = vsub.f32 %v394, %v593
        %v642 = vsub.f32 %v458, %v593
        %v643 = vsub.f32 %v395, %v594
        %v644 = vsub.f32 %v459, %v594
        %v645 = vsub.f32 %v396, %v595
        %v646 = vsub.f32 %v460, %v595
        %v647 = vsub.f32 %v397, %v596
        %v648 = vsub.f32 %v461, %v596
        %v649 = vsub.f32 %v398, %v597
        %v650 = vsub.f32 %v462, %v597
        %v651 = vsub.f32 %v399, %v598
        %v652 = vsub.f32 %v463, %v598
        %v653 = vsub.f32 %v400, %v599
        %v654 = vsub.f32 %v464, %v599
        %v655 = vsub.f32 %v401, %v600
        %v656 = vsub.f32 %v465, %v600
        %v657 = vsub.f32 %v402, %v601
        %v658 = vsub.f32 %v466, %v601
        %v659 = vsub.f32 %v403, %v602
        %v660 = vsub.f32 %v467, %v602
        %v661 = vsub.f32 %v404, %v603
        %v662 = vsub.f32 %v468, %v603
        %v663 = vsub.f32 %v405, %v604
        %v664 = vsub.f32 %v469, %v604
        %v665 = vsub.f32 %v406, %v605
        %v666 = vsub.f32 %v470, %v605
        %v667 = vsub.f32 %v407, %v606
        %v668 = vsub.f32 %v471, %v606
        %v669 = vsub.f32 %v408, %v607
        %v670 = vsub.f32 %v472, %v607
        %v671 = vsub.f32 %v409, %v608
        %v672 = vsub.f32 %v473, %v608
        %v673 = vmul.f32 %v609, %v609
        %v674 = vmul.f32 %v610, %v610
        %v675 = vmul.f32 %v611, %v611
        %v676 = vmul.f32 %v612, %v612
        %v677 = vmul.f32 %v613, %v613
        %v678 = vmul.f32 %v614, %v614
        %v679 = vmul.f32 %v615, %v615
        %v680 = vmul.f32 %v616, %v616
        %v681 = vmul.f32 %v617, %v617
        %v682 = vmul.f32 %v618, %v618
        %v683 = vmul.f32 %v619, %v619
        %v684 = vmul.f32 %v620, %v620
        %v685 = vmul.f32 %v621, %v621
        %v686 = vmul.f32 %v622, %v622
        %v687 = vmul.f32 %v623, %v623
        %v688 = vmul.f32 %v624, %v624
        %v689 = vmul.f32 %v625, %v625
        %v690 = vmul.f32 %v626, %v626
        %v691 = vmul.f32 %v627, %v627
        %v692 = vmul.f32 %v628, %v628
        %v693 = vmul.f32 %v629, %v629
        %v694 = vmul.f32 %v630, %v630
        %v695 = vmul.f32 %v631, %v631
        %v696 = vmul.f32 %v632, %v632
        %v697 = vmul.f32 %v633, %v633
        %v698 = vmul.f32 %v634, %v634
        %v699 = vmul.f32 %v635, %v635
        %v700 = vmul.f32 %v636, %v636
        %v701 = vmul.f32 %v637, %v637
        %v702 = vmul.f32 %v638, %v638
        %v703 = vmul.f32 %v639, %v639
        %v704 = vmul.f32 %v640, %v640
        %v705 = vmul.f32 %v641, %v641
        %v706 = vmul.f32 %v642, %v642
        %v707 = vmul.f32 %v643, %v643
        %v708 = vmul.f32 %v644, %v644
        %v709 = vmul.f32 %v645, %v645
        %v710 = vmul.f32 %v646, %v646
        %v711 = vmul.f32 %v647, %v647
        %v712 = vmul.f32 %v648, %v648
        %v713 = vmul.f32 %v649, %v649
        %v714 = vmul.f32 %v650, %v650
        %v715 = vmul.f32 %v651, %v651
        %v716 = vmul.f32 %v652, %v652
        %v717 = vmul.f32 %v653, %v653
        %v718 = vmul.f32 %v654, %v654
        %v719 = vmul.f32 %v655, %v655
        %v720 = vmul.f32 %v656, %v656
        %v721 = vmul.f32 %v657, %v657
        %v722 = vmul.f32 %v658, %v658
        %v723 = vmul.f32 %v659, %v659
        %v724 = vmul.f32 %v660, %v660
        %v725 = vmul.f32 %v661, %v661
        %v726 = vmul.f32 %v662, %v662
        %v727 = vmul.f32 %v663, %v663
        %v728 = vmul.f32 %v664, %v664
        %v729 = vmul.f32 %v665, %v665
        %v730 = vmul.f32 %v666, %v666
        %v731 = vmul.f32 %v667, %v667
        %v732 = vmul.f32 %v668, %v668
        %v733 = vmul.f32 %v669, %v669
        %v734 = vmul.f32 %v670, %v670
        %v735 = vmul.f32 %v671, %v671
        %v736 = vmul.f32 %v672, %v672
        %v737 = vadd.f32 %v673, %v674
        %738 = vadd.xlane.f32.xlu0 %v737
        %v739 = vpop.xlane.xlu0 %738
        %v740 = vadd.f32 %v675, %v676
        %741 = vadd.xlane.f32.xlu0 %v740
        %v742 = vpop.xlane.xlu0 %741
        %v743 = vadd.f32 %v677, %v678
        %744 = vadd.xlane.f32.xlu0 %v743
        %v745 = vpop.xlane.xlu0 %744
        %v746 = vadd.f32 %v679, %v680
        %747 = vadd.xlane.f32.xlu0 %v746
        %v748 = vpop.xlane.xlu0 %747
        %v749 = vadd.f32 %v681, %v682
        %750 = vadd.xlane.f32.xlu0 %v749
        %v751 = vpop.xlane.xlu0 %750
        %v752 = vadd.f32 %v683, %v684
        %753 = vadd.xlane.f32.xlu0 %v752
        %v754 = vpop.xlane.xlu0 %753
        %v755 = vadd.f32 %v685, %v686
        %756 = vadd.xlane.f32.xlu0 %v755
        %v757 = vpop.xlane.xlu0 %756
        %v758 = vadd.f32 %v687, %v688
        %759 = vadd.xlane.f32.xlu0 %v758
        %v760 = vpop.xlane.xlu0 %759
        %v761 = vadd.f32 %v689, %v690
        %762 = vadd.xlane.f32.xlu0 %v761
        %v763 = vpop.xlane.xlu0 %762
        %v764 = vadd.f32 %v691, %v692
        %765 = vadd.xlane.f32.xlu0 %v764
        %v766 = vpop.xlane.xlu0 %765
        %v767 = vadd.f32 %v693, %v694
        %768 = vadd.xlane.f32.xlu0 %v767
        %v769 = vpop.xlane.xlu0 %768
        %v770 = vadd.f32 %v695, %v696
        %771 = vadd.xlane.f32.xlu0 %v770
        %v772 = vpop.xlane.xlu0 %771
        %v773 = vadd.f32 %v697, %v698
        %774 = vadd.xlane.f32.xlu0 %v773
        %v775 = vpop.xlane.xlu0 %774
        %v776 = vadd.f32 %v699, %v700
        %777 = vadd.xlane.f32.xlu0 %v776
        %v778 = vpop.xlane.xlu0 %777
        %v779 = vadd.f32 %v701, %v702
        %780 = vadd.xlane.f32.xlu0 %v779
        %v781 = vpop.xlane.xlu0 %780
        %v782 = vadd.f32 %v703, %v704
        %783 = vadd.xlane.f32.xlu0 %v782
        %v784 = vpop.xlane.xlu0 %783
        %v785 = vadd.f32 %v705, %v706
        %786 = vadd.xlane.f32.xlu0 %v785
        %v787 = vpop.xlane.xlu0 %786
        %v788 = vadd.f32 %v707, %v708
        %789 = vadd.xlane.f32.xlu0 %v788
        %v790 = vpop.xlane.xlu0 %789
        %v791 = vadd.f32 %v709, %v710
        %792 = vadd.xlane.f32.xlu0 %v791
        %v793 = vpop.xlane.xlu0 %792
        %v794 = vadd.f32 %v711, %v712
        %795 = vadd.xlane.f32.xlu0 %v794
        %v796 = vpop.xlane.xlu0 %795
        %v797 = vadd.f32 %v713, %v714
        %798 = vadd.xlane.f32.xlu0 %v797
        %v799 = vpop.xlane.xlu0 %798
        %v800 = vadd.f32 %v715, %v716
        %801 = vadd.xlane.f32.xlu0 %v800
        %v802 = vpop.xlane.xlu0 %801
        %v803 = vadd.f32 %v717, %v718
        %804 = vadd.xlane.f32.xlu0 %v803
        %v805 = vpop.xlane.xlu0 %804
        %v806 = vadd.f32 %v719, %v720
        %807 = vadd.xlane.f32.xlu0 %v806
        %v808 = vpop.xlane.xlu0 %807
        %v809 = vadd.f32 %v721, %v722
        %810 = vadd.xlane.f32.xlu0 %v809
        %v811 = vpop.xlane.xlu0 %810
        %v812 = vadd.f32 %v723, %v724
        %813 = vadd.xlane.f32.xlu0 %v812
        %v814 = vpop.xlane.xlu0 %813
        %v815 = vadd.f32 %v725, %v726
        %816 = vadd.xlane.f32.xlu0 %v815
        %v817 = vpop.xlane.xlu0 %816
        %v818 = vadd.f32 %v727, %v728
        %819 = vadd.xlane.f32.xlu0 %v818
        %v820 = vpop.xlane.xlu0 %819
        %v821 = vadd.f32 %v729, %v730
        %822 = vadd.xlane.f32.xlu0 %v821
        %v823 = vpop.xlane.xlu0 %822
        %v824 = vadd.f32 %v731, %v732
        %825 = vadd.xlane.f32.xlu0 %v824
        %v826 = vpop.xlane.xlu0 %825
        %v827 = vadd.f32 %v733, %v734
        %828 = vadd.xlane.f32.xlu0 %v827
        %v829 = vpop.xlane.xlu0 %828
        %v830 = vadd.f32 %v735, %v736
        %831 = vadd.xlane.f32.xlu0 %v830
        %v832 = vpop.xlane.xlu0 %831
        %v833 = vmul.f32 %v739, %v576
        %v834 = vmul.f32 %v742, %v576
        %v835 = vmul.f32 %v745, %v576
        %v836 = vmul.f32 %v748, %v576
        %v837 = vmul.f32 %v751, %v576
        %v838 = vmul.f32 %v754, %v576
        %v839 = vmul.f32 %v757, %v576
        %v840 = vmul.f32 %v760, %v576
        %v841 = vmul.f32 %v763, %v576
        %v842 = vmul.f32 %v766, %v576
        %v843 = vmul.f32 %v769, %v576
        %v844 = vmul.f32 %v772, %v576
        %v845 = vmul.f32 %v775, %v576
        %v846 = vmul.f32 %v778, %v576
        %v847 = vmul.f32 %v781, %v576
        %v848 = vmul.f32 %v784, %v576
        %v849 = vmul.f32 %v787, %v576
        %v850 = vmul.f32 %v790, %v576
        %v851 = vmul.f32 %v793, %v576
        %v852 = vmul.f32 %v796, %v576
        %v853 = vmul.f32 %v799, %v576
        %v854 = vmul.f32 %v802, %v576
        %v855 = vmul.f32 %v805, %v576
        %v856 = vmul.f32 %v808, %v576
        %v857 = vmul.f32 %v811, %v576
        %v858 = vmul.f32 %v814, %v576
        %v859 = vmul.f32 %v817, %v576
        %v860 = vmul.f32 %v820, %v576
        %v861 = vmul.f32 %v823, %v576
        %v862 = vmul.f32 %v826, %v576
        %v863 = vmul.f32 %v829, %v576
        %v864 = vmul.f32 %v832, %v576
        %v865 = vadd.f32 %v833, 1e-05
        %v866 = vadd.f32 %v834, 1e-05
        %v867 = vadd.f32 %v835, 1e-05
        %v868 = vadd.f32 %v836, 1e-05
        %v869 = vadd.f32 %v837, 1e-05
        %v870 = vadd.f32 %v838, 1e-05
        %v871 = vadd.f32 %v839, 1e-05
        %v872 = vadd.f32 %v840, 1e-05
        %v873 = vadd.f32 %v841, 1e-05
        %v874 = vadd.f32 %v842, 1e-05
        %v875 = vadd.f32 %v843, 1e-05
        %v876 = vadd.f32 %v844, 1e-05
        %v877 = vadd.f32 %v845, 1e-05
        %v878 = vadd.f32 %v846, 1e-05
        %v879 = vadd.f32 %v847, 1e-05
        %v880 = vadd.f32 %v848, 1e-05
        %v881 = vadd.f32 %v849, 1e-05
        %v882 = vadd.f32 %v850, 1e-05
        %v883 = vadd.f32 %v851, 1e-05
        %v884 = vadd.f32 %v852, 1e-05
        %v885 = vadd.f32 %v853, 1e-05
        %v886 = vadd.f32 %v854, 1e-05
        %v887 = vadd.f32 %v855, 1e-05
        %v888 = vadd.f32 %v856, 1e-05
        %v889 = vadd.f32 %v857, 1e-05
        %v890 = vadd.f32 %v858, 1e-05
        %v891 = vadd.f32 %v859, 1e-05
        %v892 = vadd.f32 %v860, 1e-05
        %v893 = vadd.f32 %v861, 1e-05
        %v894 = vadd.f32 %v862, 1e-05
        %v895 = vadd.f32 %v863, 1e-05
        %v896 = vadd.f32 %v864, 1e-05
        %v897 = vrsqrt.pop %v865
        %v898 = vmul.f32 %v897, %v865
        %v899 = vmul.f32 %v898, %v897
        %v900 = vmul.f32 0.5, %v899
        %v901 = vsub.f32 1.5, %v900
        %v902 = vmul.f32 %v897, %v901
        %vm903 = vweird.f32 %v865
        %vm904 = vweird.f32 %v897
        %vm905 = vmor %vm903, %vm904
        %v906 = vsel %vm905, %v897, %v902
        %v907 = vrsqrt.pop %v866
        %v908 = vmul.f32 %v907, %v866
        %v909 = vmul.f32 %v908, %v907
        %v910 = vmul.f32 0.5, %v909
        %v911 = vsub.f32 1.5, %v910
        %v912 = vmul.f32 %v907, %v911
        %vm913 = vweird.f32 %v866
        %vm914 = vweird.f32 %v907
        %vm915 = vmor %vm913, %vm914
        %v916 = vsel %vm915, %v907, %v912
        %v917 = vrsqrt.pop %v867
        %v918 = vmul.f32 %v917, %v867
        %v919 = vmul.f32 %v918, %v917
        %v920 = vmul.f32 0.5, %v919
        %v921 = vsub.f32 1.5, %v920
        %v922 = vmul.f32 %v917, %v921
        %vm923 = vweird.f32 %v867
        %vm924 = vweird.f32 %v917
        %vm925 = vmor %vm923, %vm924
        %v926 = vsel %vm925, %v917, %v922
        %v927 = vrsqrt.pop %v868
        %v928 = vmul.f32 %v927, %v868
        %v929 = vmul.f32 %v928, %v927
        %v930 = vmul.f32 0.5, %v929
        %v931 = vsub.f32 1.5, %v930
        %v932 = vmul.f32 %v927, %v931
        %vm933 = vweird.f32 %v868
        %vm934 = vweird.f32 %v927
        %vm935 = vmor %vm933, %vm934
        %v936 = vsel %vm935, %v927, %v932
        %v937 = vrsqrt.pop %v869
        %v938 = vmul.f32 %v937, %v869
        %v939 = vmul.f32 %v938, %v937
        %v940 = vmul.f32 0.5, %v939
        %v941 = vsub.f32 1.5, %v940
        %v942 = vmul.f32 %v937, %v941
        %vm943 = vweird.f32 %v869
        %vm944 = vweird.f32 %v937
        %vm945 = vmor %vm943, %vm944
        %v946 = vsel %vm945, %v937, %v942
        %v947 = vrsqrt.pop %v870
        %v948 = vmul.f32 %v947, %v870
        %v949 = vmul.f32 %v948, %v947
        %v950 = vmul.f32 0.5, %v949
        %v951 = vsub.f32 1.5, %v950
        %v952 = vmul.f32 %v947, %v951
        %vm953 = vweird.f32 %v870
        %vm954 = vweird.f32 %v947
        %vm955 = vmor %vm953, %vm954
        %v956 = vsel %vm955, %v947, %v952
        %v957 = vrsqrt.pop %v871
        %v958 = vmul.f32 %v957, %v871
        %v959 = vmul.f32 %v958, %v957
        %v960 = vmul.f32 0.5, %v959
        %v961 = vsub.f32 1.5, %v960
        %v962 = vmul.f32 %v957, %v961
        %vm963 = vweird.f32 %v871
        %vm964 = vweird.f32 %v957
        %vm965 = vmor %vm963, %vm964
        %v966 = vsel %vm965, %v957, %v962
        %v967 = vrsqrt.pop %v872
        %v968 = vmul.f32 %v967, %v872
        %v969 = vmul.f32 %v968, %v967
        %v970 = vmul.f32 0.5, %v969
        %v971 = vsub.f32 1.5, %v970
        %v972 = vmul.f32 %v967, %v971
        %vm973 = vweird.f32 %v872
        %vm974 = vweird.f32 %v967
        %vm975 = vmor %vm973, %vm974
        %v976 = vsel %vm975, %v967, %v972
        %v977 = vrsqrt.pop %v873
        %v978 = vmul.f32 %v977, %v873
        %v979 = vmul.f32 %v978, %v977
        %v980 = vmul.f32 0.5, %v979
        %v981 = vsub.f32 1.5, %v980
        %v982 = vmul.f32 %v977, %v981
        %vm983 = vweird.f32 %v873
        %vm984 = vweird.f32 %v977
        %vm985 = vmor %vm983, %vm984
        %v986 = vsel %vm985, %v977, %v982
        %v987 = vrsqrt.pop %v874
        %v988 = vmul.f32 %v987, %v874
        %v989 = vmul.f32 %v988, %v987
        %v990 = vmul.f32 0.5, %v989
        %v991 = vsub.f32 1.5, %v990
        %v992 = vmul.f32 %v987, %v991
        %vm993 = vweird.f32 %v874
        %vm994 = vweird.f32 %v987
        %vm995 = vmor %vm993, %vm994
        %v996 = vsel %vm995, %v987, %v992
        %v997 = vrsqrt.pop %v875
        %v998 = vmul.f32 %v997, %v875
        %v999 = vmul.f32 %v998, %v997
        %v1000 = vmul.f32 0.5, %v999
        %v1001 = vsub.f32 1.5, %v1000
        %v1002 = vmul.f32 %v997, %v1001
        %vm1003 = vweird.f32 %v875
        %vm1004 = vweird.f32 %v997
        %vm1005 = vmor %vm1003, %vm1004
        %v1006 = vsel %vm1005, %v997, %v1002
        %v1007 = vrsqrt.pop %v876
        %v1008 = vmul.f32 %v1007, %v876
        %v1009 = vmul.f32 %v1008, %v1007
        %v1010 = vmul.f32 0.5, %v1009
        %v1011 = vsub.f32 1.5, %v1010
        %v1012 = vmul.f32 %v1007, %v1011
        %vm1013 = vweird.f32 %v876
        %vm1014 = vweird.f32 %v1007
        %vm1015 = vmor %vm1013, %vm1014
        %v1016 = vsel %vm1015, %v1007, %v1012
        %v1017 = vrsqrt.pop %v877
        %v1018 = vmul.f32 %v1017, %v877
        %v1019 = vmul.f32 %v1018, %v1017
        %v1020 = vmul.f32 0.5, %v1019
        %v1021 = vsub.f32 1.5, %v1020
        %v1022 = vmul.f32 %v1017, %v1021
        %vm1023 = vweird.f32 %v877
        %vm1024 = vweird.f32 %v1017
        %vm1025 = vmor %vm1023, %vm1024
        %v1026 = vsel %vm1025, %v1017, %v1022
        %v1027 = vrsqrt.pop %v878
        %v1028 = vmul.f32 %v1027, %v878
        %v1029 = vmul.f32 %v1028, %v1027
        %v1030 = vmul.f32 0.5, %v1029
        %v1031 = vsub.f32 1.5, %v1030
        %v1032 = vmul.f32 %v1027, %v1031
        %vm1033 = vweird.f32 %v878
        %vm1034 = vweird.f32 %v1027
        %vm1035 = vmor %vm1033, %vm1034
        %v1036 = vsel %vm1035, %v1027, %v1032
        %v1037 = vrsqrt.pop %v879
        %v1038 = vmul.f32 %v1037, %v879
        %v1039 = vmul.f32 %v1038, %v1037
        %v1040 = vmul.f32 0.5, %v1039
        %v1041 = vsub.f32 1.5, %v1040
        %v1042 = vmul.f32 %v1037, %v1041
        %vm1043 = vweird.f32 %v879
        %vm1044 = vweird.f32 %v1037
        %vm1045 = vmor %vm1043, %vm1044
        %v1046 = vsel %vm1045, %v1037, %v1042
        %v1047 = vrsqrt.pop %v880
        %v1048 = vmul.f32 %v1047, %v880
        %v1049 = vmul.f32 %v1048, %v1047
        %v1050 = vmul.f32 0.5, %v1049
        %v1051 = vsub.f32 1.5, %v1050
        %v1052 = vmul.f32 %v1047, %v1051
        %vm1053 = vweird.f32 %v880
        %vm1054 = vweird.f32 %v1047
        %vm1055 = vmor %vm1053, %vm1054
        %v1056 = vsel %vm1055, %v1047, %v1052
        %v1057 = vrsqrt.pop %v881
        %v1058 = vmul.f32 %v1057, %v881
        %v1059 = vmul.f32 %v1058, %v1057
        %v1060 = vmul.f32 0.5, %v1059
        %v1061 = vsub.f32 1.5, %v1060
        %v1062 = vmul.f32 %v1057, %v1061
        %vm1063 = vweird.f32 %v881
        %vm1064 = vweird.f32 %v1057
        %vm1065 = vmor %vm1063, %vm1064
        %v1066 = vsel %vm1065, %v1057, %v1062
        %v1067 = vrsqrt.pop %v882
        %v1068 = vmul.f32 %v1067, %v882
        %v1069 = vmul.f32 %v1068, %v1067
        %v1070 = vmul.f32 0.5, %v1069
        %v1071 = vsub.f32 1.5, %v1070
        %v1072 = vmul.f32 %v1067, %v1071
        %vm1073 = vweird.f32 %v882
        %vm1074 = vweird.f32 %v1067
        %vm1075 = vmor %vm1073, %vm1074
        %v1076 = vsel %vm1075, %v1067, %v1072
        %v1077 = vrsqrt.pop %v883
        %v1078 = vmul.f32 %v1077, %v883
        %v1079 = vmul.f32 %v1078, %v1077
        %v1080 = vmul.f32 0.5, %v1079
        %v1081 = vsub.f32 1.5, %v1080
        %v1082 = vmul.f32 %v1077, %v1081
        %vm1083 = vweird.f32 %v883
        %vm1084 = vweird.f32 %v1077
        %vm1085 = vmor %vm1083, %vm1084
        %v1086 = vsel %vm1085, %v1077, %v1082
        %v1087 = vrsqrt.pop %v884
        %v1088 = vmul.f32 %v1087, %v884
        %v1089 = vmul.f32 %v1088, %v1087
        %v1090 = vmul.f32 0.5, %v1089
        %v1091 = vsub.f32 1.5, %v1090
        %v1092 = vmul.f32 %v1087, %v1091
        %vm1093 = vweird.f32 %v884
        %vm1094 = vweird.f32 %v1087
        %vm1095 = vmor %vm1093, %vm1094
        %v1096 = vsel %vm1095, %v1087, %v1092
        %v1097 = vrsqrt.pop %v885
        %v1098 = vmul.f32 %v1097, %v885
        %v1099 = vmul.f32 %v1098, %v1097
        %v1100 = vmul.f32 0.5, %v1099
        %v1101 = vsub.f32 1.5, %v1100
        %v1102 = vmul.f32 %v1097, %v1101
        %vm1103 = vweird.f32 %v885
        %vm1104 = vweird.f32 %v1097
        %vm1105 = vmor %vm1103, %vm1104
        %v1106 = vsel %vm1105, %v1097, %v1102
        %v1107 = vrsqrt.pop %v886
        %v1108 = vmul.f32 %v1107, %v886
        %v1109 = vmul.f32 %v1108, %v1107
        %v1110 = vmul.f32 0.5, %v1109
        %v1111 = vsub.f32 1.5, %v1110
        %v1112 = vmul.f32 %v1107, %v1111
        %vm1113 = vweird.f32 %v886
        %vm1114 = vweird.f32 %v1107
        %vm1115 = vmor %vm1113, %vm1114
        %v1116 = vsel %vm1115, %v1107, %v1112
        %v1117 = vrsqrt.pop %v887
        %v1118 = vmul.f32 %v1117, %v887
        %v1119 = vmul.f32 %v1118, %v1117
        %v1120 = vmul.f32 0.5, %v1119
        %v1121 = vsub.f32 1.5, %v1120
        %v1122 = vmul.f32 %v1117, %v1121
        %vm1123 = vweird.f32 %v887
        %vm1124 = vweird.f32 %v1117
        %vm1125 = vmor %vm1123, %vm1124
        %v1126 = vsel %vm1125, %v1117, %v1122
        %v1127 = vrsqrt.pop %v888
        %v1128 = vmul.f32 %v1127, %v888
        %v1129 = vmul.f32 %v1128, %v1127
        %v1130 = vmul.f32 0.5, %v1129
        %v1131 = vsub.f32 1.5, %v1130
        %v1132 = vmul.f32 %v1127, %v1131
        %vm1133 = vweird.f32 %v888
        %vm1134 = vweird.f32 %v1127
        %vm1135 = vmor %vm1133, %vm1134
        %v1136 = vsel %vm1135, %v1127, %v1132
        %v1137 = vrsqrt.pop %v889
        %v1138 = vmul.f32 %v1137, %v889
        %v1139 = vmul.f32 %v1138, %v1137
        %v1140 = vmul.f32 0.5, %v1139
        %v1141 = vsub.f32 1.5, %v1140
        %v1142 = vmul.f32 %v1137, %v1141
        %vm1143 = vweird.f32 %v889
        %vm1144 = vweird.f32 %v1137
        %vm1145 = vmor %vm1143, %vm1144
        %v1146 = vsel %vm1145, %v1137, %v1142
        %v1147 = vrsqrt.pop %v890
        %v1148 = vmul.f32 %v1147, %v890
        %v1149 = vmul.f32 %v1148, %v1147
        %v1150 = vmul.f32 0.5, %v1149
        %v1151 = vsub.f32 1.5, %v1150
        %v1152 = vmul.f32 %v1147, %v1151
        %vm1153 = vweird.f32 %v890
        %vm1154 = vweird.f32 %v1147
        %vm1155 = vmor %vm1153, %vm1154
        %v1156 = vsel %vm1155, %v1147, %v1152
        %v1157 = vrsqrt.pop %v891
        %v1158 = vmul.f32 %v1157, %v891
        %v1159 = vmul.f32 %v1158, %v1157
        %v1160 = vmul.f32 0.5, %v1159
        %v1161 = vsub.f32 1.5, %v1160
        %v1162 = vmul.f32 %v1157, %v1161
        %vm1163 = vweird.f32 %v891
        %vm1164 = vweird.f32 %v1157
        %vm1165 = vmor %vm1163, %vm1164
        %v1166 = vsel %vm1165, %v1157, %v1162
        %v1167 = vrsqrt.pop %v892
        %v1168 = vmul.f32 %v1167, %v892
        %v1169 = vmul.f32 %v1168, %v1167
        %v1170 = vmul.f32 0.5, %v1169
        %v1171 = vsub.f32 1.5, %v1170
        %v1172 = vmul.f32 %v1167, %v1171
        %vm1173 = vweird.f32 %v892
        %vm1174 = vweird.f32 %v1167
        %vm1175 = vmor %vm1173, %vm1174
        %v1176 = vsel %vm1175, %v1167, %v1172
        %v1177 = vrsqrt.pop %v893
        %v1178 = vmul.f32 %v1177, %v893
        %v1179 = vmul.f32 %v1178, %v1177
        %v1180 = vmul.f32 0.5, %v1179
        %v1181 = vsub.f32 1.5, %v1180
        %v1182 = vmul.f32 %v1177, %v1181
        %vm1183 = vweird.f32 %v893
        %vm1184 = vweird.f32 %v1177
        %vm1185 = vmor %vm1183, %vm1184
        %v1186 = vsel %vm1185, %v1177, %v1182
        %v1187 = vrsqrt.pop %v894
        %v1188 = vmul.f32 %v1187, %v894
        %v1189 = vmul.f32 %v1188, %v1187
        %v1190 = vmul.f32 0.5, %v1189
        %v1191 = vsub.f32 1.5, %v1190
        %v1192 = vmul.f32 %v1187, %v1191
        %vm1193 = vweird.f32 %v894
        %vm1194 = vweird.f32 %v1187
        %vm1195 = vmor %vm1193, %vm1194
        %v1196 = vsel %vm1195, %v1187, %v1192
        %v1197 = vrsqrt.pop %v895
        %v1198 = vmul.f32 %v1197, %v895
        %v1199 = vmul.f32 %v1198, %v1197
        %v1200 = vmul.f32 0.5, %v1199
        %v1201 = vsub.f32 1.5, %v1200
        %v1202 = vmul.f32 %v1197, %v1201
        %vm1203 = vweird.f32 %v895
        %vm1204 = vweird.f32 %v1197
        %vm1205 = vmor %vm1203, %vm1204
        %v1206 = vsel %vm1205, %v1197, %v1202
        %v1207 = vrsqrt.pop %v896
        %v1208 = vmul.f32 %v1207, %v896
        %v1209 = vmul.f32 %v1208, %v1207
        %v1210 = vmul.f32 0.5, %v1209
        %v1211 = vsub.f32 1.5, %v1210
        %v1212 = vmul.f32 %v1207, %v1211
        %vm1213 = vweird.f32 %v896
        %vm1214 = vweird.f32 %v1207
        %vm1215 = vmor %vm1213, %vm1214
        %v1216 = vsel %vm1215, %v1207, %v1212
        %v1217 = vmul.f32 %v609, %v906
        %v1218 = vmul.f32 %v610, %v906
        %v1219 = vmul.f32 %v611, %v916
        %v1220 = vmul.f32 %v612, %v916
        %v1221 = vmul.f32 %v613, %v926
        %v1222 = vmul.f32 %v614, %v926
        %v1223 = vmul.f32 %v615, %v936
        %v1224 = vmul.f32 %v616, %v936
        %v1225 = vmul.f32 %v617, %v946
        %v1226 = vmul.f32 %v618, %v946
        %v1227 = vmul.f32 %v619, %v956
        %v1228 = vmul.f32 %v620, %v956
        %v1229 = vmul.f32 %v621, %v966
        %v1230 = vmul.f32 %v622, %v966
        %v1231 = vmul.f32 %v623, %v976
        %v1232 = vmul.f32 %v624, %v976
        %v1233 = vmul.f32 %v625, %v986
        %v1234 = vmul.f32 %v626, %v986
        %v1235 = vmul.f32 %v627, %v996
        %v1236 = vmul.f32 %v628, %v996
        %v1237 = vmul.f32 %v629, %v1006
        %v1238 = vmul.f32 %v630, %v1006
        %v1239 = vmul.f32 %v631, %v1016
        %v1240 = vmul.f32 %v632, %v1016
        %v1241 = vmul.f32 %v633, %v1026
        %v1242 = vmul.f32 %v634, %v1026
        %v1243 = vmul.f32 %v635, %v1036
        %v1244 = vmul.f32 %v636, %v1036
        %v1245 = vmul.f32 %v637, %v1046
        %v1246 = vmul.f32 %v638, %v1046
        %v1247 = vmul.f32 %v639, %v1056
        %v1248 = vmul.f32 %v640, %v1056
        %v1249 = vmul.f32 %v641, %v1066
        %v1250 = vmul.f32 %v642, %v1066
        %v1251 = vmul.f32 %v643, %v1076
        %v1252 = vmul.f32 %v644, %v1076
        %v1253 = vmul.f32 %v645, %v1086
        %v1254 = vmul.f32 %v646, %v1086
        %v1255 = vmul.f32 %v647, %v1096
        %v1256 = vmul.f32 %v648, %v1096
        %v1257 = vmul.f32 %v649, %v1106
        %v1258 = vmul.f32 %v650, %v1106
        %v1259 = vmul.f32 %v651, %v1116
        %v1260 = vmul.f32 %v652, %v1116
        %v1261 = vmul.f32 %v653, %v1126
        %v1262 = vmul.f32 %v654, %v1126
        %v1263 = vmul.f32 %v655, %v1136
        %v1264 = vmul.f32 %v656, %v1136
        %v1265 = vmul.f32 %v657, %v1146
        %v1266 = vmul.f32 %v658, %v1146
        %v1267 = vmul.f32 %v659, %v1156
        %v1268 = vmul.f32 %v660, %v1156
        %v1269 = vmul.f32 %v661, %v1166
        %v1270 = vmul.f32 %v662, %v1166
        %v1271 = vmul.f32 %v663, %v1176
        %v1272 = vmul.f32 %v664, %v1176
        %v1273 = vmul.f32 %v665, %v1186
        %v1274 = vmul.f32 %v666, %v1186
        %v1275 = vmul.f32 %v667, %v1196
        %v1276 = vmul.f32 %v668, %v1196
        %v1277 = vmul.f32 %v669, %v1206
        %v1278 = vmul.f32 %v670, %v1206
        %v1279 = vmul.f32 %v671, %v1216
        %v1280 = vmul.f32 %v672, %v1216
        %v1281 = vpack.c.bf16 %v1219, %v1217
        %v1282 = vpack.c.bf16 %v1220, %v1218
        %v1283 = vpack.c.bf16 %v1223, %v1221
        %v1284 = vpack.c.bf16 %v1224, %v1222
        %v1285 = vpack.c.bf16 %v1227, %v1225
        %v1286 = vpack.c.bf16 %v1228, %v1226
        %v1287 = vpack.c.bf16 %v1231, %v1229
        %v1288 = vpack.c.bf16 %v1232, %v1230
        %v1289 = vpack.c.bf16 %v1235, %v1233
        %v1290 = vpack.c.bf16 %v1236, %v1234
        %v1291 = vpack.c.bf16 %v1239, %v1237
        %v1292 = vpack.c.bf16 %v1240, %v1238
        %v1293 = vpack.c.bf16 %v1243, %v1241
        %v1294 = vpack.c.bf16 %v1244, %v1242
        %v1295 = vpack.c.bf16 %v1247, %v1245
        %v1296 = vpack.c.bf16 %v1248, %v1246
        %v1297 = vpack.c.bf16 %v1251, %v1249
        %v1298 = vpack.c.bf16 %v1252, %v1250
        %v1299 = vpack.c.bf16 %v1255, %v1253
        %v1300 = vpack.c.bf16 %v1256, %v1254
        %v1301 = vpack.c.bf16 %v1259, %v1257
        %v1302 = vpack.c.bf16 %v1260, %v1258
        %v1303 = vpack.c.bf16 %v1263, %v1261
        %v1304 = vpack.c.bf16 %v1264, %v1262
        %v1305 = vpack.c.bf16 %v1267, %v1265
        %v1306 = vpack.c.bf16 %v1268, %v1266
        %v1307 = vpack.c.bf16 %v1271, %v1269
        %v1308 = vpack.c.bf16 %v1272, %v1270
        %v1309 = vpack.c.bf16 %v1275, %v1273
        %v1310 = vpack.c.bf16 %v1276, %v1274
        %v1311 = vpack.c.bf16 %v1279, %v1277
        %v1312 = vpack.c.bf16 %v1280, %v1278
        %v1313 = vld [vmem:[#allocation5] sm:$0xf]
        %v1314 = vld [vmem:[#allocation5 + $0x4] sm:$0xf]
        %v1315 = vld [vmem:[#allocation5 + $0x8] sm:$0xf]
        %v1316 = vld [vmem:[#allocation5 + $0xc] sm:$0xf]
        %v1317 = vld [vmem:[#allocation5 + $0x10] sm:$0xf]
        %v1318 = vld [vmem:[#allocation5 + $0x14] sm:$0xf]
        %v1319 = vld [vmem:[#allocation5 + $0x18] sm:$0xf]
        %v1320 = vld [vmem:[#allocation5 + $0x1c] sm:$0xf]
        %v1321 = vld [vmem:[#allocation5 + $0x20] sm:$0xf]
        %v1322 = vld [vmem:[#allocation5 + $0x24] sm:$0xf]
        %v1323 = vld [vmem:[#allocation5 + $0x28] sm:$0xf]
        %v1324 = vld [vmem:[#allocation5 + $0x2c] sm:$0xf]
        %v1325 = vld [vmem:[#allocation5 + $0x30] sm:$0xf]
        %v1326 = vld [vmem:[#allocation5 + $0x34] sm:$0xf]
        %v1327 = vld [vmem:[#allocation5 + $0x38] sm:$0xf]
        %v1328 = vld [vmem:[#allocation5 + $0x3c] sm:$0xf]
        %v1329 = vld [vmem:[#allocation5 + $0x40] sm:$0xf]
        %v1330 = vld [vmem:[#allocation5 + $0x44] sm:$0xf]
        %v1331 = vld [vmem:[#allocation5 + $0x48] sm:$0xf]
        %v1332 = vld [vmem:[#allocation5 + $0x4c] sm:$0xf]
        %v1333 = vld [vmem:[#allocation5 + $0x50] sm:$0xf]
        %v1334 = vld [vmem:[#allocation5 + $0x54] sm:$0xf]
        %v1335 = vld [vmem:[#allocation5 + $0x58] sm:$0xf]
        %v1336 = vld [vmem:[#allocation5 + $0x5c] sm:$0xf]
        %v1337 = vld [vmem:[#allocation5 + $0x60] sm:$0xf]
        %v1338 = vld [vmem:[#allocation5 + $0x64] sm:$0xf]
        %v1339 = vld [vmem:[#allocation5 + $0x68] sm:$0xf]
        %v1340 = vld [vmem:[#allocation5 + $0x6c] sm:$0xf]
        %v1341 = vld [vmem:[#allocation5 + $0x70] sm:$0xf]
        %v1342 = vld [vmem:[#allocation5 + $0x74] sm:$0xf]
        %v1343 = vld [vmem:[#allocation5 + $0x78] sm:$0xf]
        %v1344 = vld [vmem:[#allocation5 + $0x7c] sm:$0xf]
        %v1345 = vld [vmem:[%s2] sm:$0x1]
        %v1347 = vperm.slane %v1345, 0
        %v1381 = vunpack.c.l.b16 %v1313
        %v1382 = vunpack.c.l.b16 %v1314
        %v1383 = vunpack.c.l.b16 %v1315
        %v1384 = vunpack.c.l.b16 %v1316
        %v1385 = vunpack.c.l.b16 %v1317
        %v1386 = vunpack.c.l.b16 %v1318
        %v1387 = vunpack.c.l.b16 %v1319
        %v1388 = vunpack.c.l.b16 %v1320
        %v1389 = vunpack.c.l.b16 %v1321
        %v1390 = vunpack.c.l.b16 %v1322
        %v1391 = vunpack.c.l.b16 %v1323
        %v1392 = vunpack.c.l.b16 %v1324
        %v1393 = vunpack.c.l.b16 %v1325
        %v1394 = vunpack.c.l.b16 %v1326
        %v1395 = vunpack.c.l.b16 %v1327
        %v1396 = vunpack.c.l.b16 %v1328
        %v1397 = vunpack.c.l.b16 %v1329
        %v1398 = vunpack.c.l.b16 %v1330
        %v1399 = vunpack.c.l.b16 %v1331
        %v1400 = vunpack.c.l.b16 %v1332
        %v1401 = vunpack.c.l.b16 %v1333
        %v1402 = vunpack.c.l.b16 %v1334
        %v1403 = vunpack.c.l.b16 %v1335
        %v1404 = vunpack.c.l.b16 %v1336
        %v1405 = vunpack.c.l.b16 %v1337
        %v1406 = vunpack.c.l.b16 %v1338
        %v1407 = vunpack.c.l.b16 %v1339
        %v1408 = vunpack.c.l.b16 %v1340
        %v1409 = vunpack.c.l.b16 %v1341
        %v1410 = vunpack.c.l.b16 %v1342
        %v1411 = vunpack.c.l.b16 %v1343
        %v1412 = vunpack.c.l.b16 %v1344
        %v1413 = vpack.c.b16 %v1382, %v1381
        %v1414 = vpack.c.b16 %v1384, %v1383
        %v1415 = vpack.c.b16 %v1386, %v1385
        %v1416 = vpack.c.b16 %v1388, %v1387
        %v1417 = vpack.c.b16 %v1390, %v1389
        %v1418 = vpack.c.b16 %v1392, %v1391
        %v1419 = vpack.c.b16 %v1394, %v1393
        %v1420 = vpack.c.b16 %v1396, %v1395
        %v1421 = vpack.c.b16 %v1398, %v1397
        %v1422 = vpack.c.b16 %v1400, %v1399
        %v1423 = vpack.c.b16 %v1402, %v1401
        %v1424 = vpack.c.b16 %v1404, %v1403
        %v1425 = vpack.c.b16 %v1406, %v1405
        %v1426 = vpack.c.b16 %v1408, %v1407
        %v1427 = vpack.c.b16 %v1410, %v1409
        %v1428 = vpack.c.b16 %v1412, %v1411
        %1445 = vmatpush.bf16.msra.mxu0 %v1420
        %1446 = vmatpush.bf16.msra.mxu0 %v1419
        %1447 = vmatpush.bf16.msra.mxu0 %v1418
        %1448 = vmatpush.bf16.msra.mxu0 %v1417
        %1449 = vmatpush.bf16.msra.mxu0 %v1416
        %1450 = vmatpush.bf16.msra.mxu0 %v1415
        %1451 = vmatpush.bf16.msra.mxu0 %v1414
        %1452 = vmatpush.bf16.msra.mxu0 %v1413
        %1453 = vmatmul.bf16.gmra.mxu0 %v1281
        %v1454 = vpop.f32.mrf.mxu0
        %v1455 = vadd.f32 %v1347, %v1454
        %v1456 = vpop.f32.mrf.mxu0
        %v1457 = vadd.f32 %v1347, %v1456
        %1458 = vmatmul.bf16.gmra.mxu0 %v1283
        %v1459 = vpop.f32.mrf.mxu0
        %v1460 = vadd.f32 %v1347, %v1459
        %v1461 = vpop.f32.mrf.mxu0
        %v1462 = vadd.f32 %v1347, %v1461
        %1463 = vmatmul.bf16.gmra.mxu0 %v1285
        %v1464 = vpop.f32.mrf.mxu0
        %v1465 = vadd.f32 %v1347, %v1464
        %v1466 = vpop.f32.mrf.mxu0
        %v1467 = vadd.f32 %v1347, %v1466
        %1468 = vmatmul.bf16.gmra.mxu0 %v1287
        %v1469 = vpop.f32.mrf.mxu0
        %v1470 = vadd.f32 %v1347, %v1469
        %v1471 = vpop.f32.mrf.mxu0
        %v1472 = vadd.f32 %v1347, %v1471
        %1473 = vmatmul.bf16.gmra.mxu0 %v1289
        %v1474 = vpop.f32.mrf.mxu0
        %v1475 = vadd.f32 %v1347, %v1474
        %v1476 = vpop.f32.mrf.mxu0
        %v1477 = vadd.f32 %v1347, %v1476
        %1478 = vmatmul.bf16.gmra.mxu0 %v1291
        %v1479 = vpop.f32.mrf.mxu0
        %v1480 = vadd.f32 %v1347, %v1479
        %v1481 = vpop.f32.mrf.mxu0
        %v1482 = vadd.f32 %v1347, %v1481
        %1483 = vmatmul.bf16.gmra.mxu0 %v1293
        %v1484 = vpop.f32.mrf.mxu0
        %v1485 = vadd.f32 %v1347, %v1484
        %v1486 = vpop.f32.mrf.mxu0
        %v1487 = vadd.f32 %v1347, %v1486
        %1488 = vmatmul.bf16.gmra.mxu0 %v1295
        %v1489 = vpop.f32.mrf.mxu0
        %v1490 = vadd.f32 %v1347, %v1489
        %v1491 = vpop.f32.mrf.mxu0
        %v1492 = vadd.f32 %v1347, %v1491
        %1493 = vmatmul.bf16.gmra.mxu0 %v1297
        %v1494 = vpop.f32.mrf.mxu0
        %v1495 = vadd.f32 %v1347, %v1494
        %v1496 = vpop.f32.mrf.mxu0
        %v1497 = vadd.f32 %v1347, %v1496
        %1498 = vmatmul.bf16.gmra.mxu0 %v1299
        %v1499 = vpop.f32.mrf.mxu0
        %v1500 = vadd.f32 %v1347, %v1499
        %v1501 = vpop.f32.mrf.mxu0
        %v1502 = vadd.f32 %v1347, %v1501
        %1503 = vmatmul.bf16.gmra.mxu0 %v1301
        %v1504 = vpop.f32.mrf.mxu0
        %v1505 = vadd.f32 %v1347, %v1504
        %v1506 = vpop.f32.mrf.mxu0
        %v1507 = vadd.f32 %v1347, %v1506
        %1508 = vmatmul.bf16.gmra.mxu0 %v1303
        %v1509 = vpop.f32.mrf.mxu0
        %v1510 = vadd.f32 %v1347, %v1509
        %v1511 = vpop.f32.mrf.mxu0
        %v1512 = vadd.f32 %v1347, %v1511
        %1513 = vmatmul.bf16.gmra.mxu0 %v1305
        %v1514 = vpop.f32.mrf.mxu0
        %v1515 = vadd.f32 %v1347, %v1514
        %v1516 = vpop.f32.mrf.mxu0
        %v1517 = vadd.f32 %v1347, %v1516
        %1518 = vmatmul.bf16.gmra.mxu0 %v1307
        %v1519 = vpop.f32.mrf.mxu0
        %v1520 = vadd.f32 %v1347, %v1519
        %v1521 = vpop.f32.mrf.mxu0
        %v1522 = vadd.f32 %v1347, %v1521
        %1523 = vmatmul.bf16.gmra.mxu0 %v1309
        %v1524 = vpop.f32.mrf.mxu0
        %v1525 = vadd.f32 %v1347, %v1524
        %v1526 = vpop.f32.mrf.mxu0
        %v1527 = vadd.f32 %v1347, %v1526
        %1528 = vmatmul.bf16.gmra.mxu0 %v1311
        %v1529 = vpop.f32.mrf.mxu0
        %v1530 = vadd.f32 %v1347, %v1529
        %v1531 = vpop.f32.mrf.mxu0
        %v1532 = vadd.f32 %v1347, %v1531
        %1533 = vdwg.mxu0
        %1534 = vmatpush.bf16.msra.mxu0 %v1428
        %1535 = vmatpush.bf16.msra.mxu0 %v1427
        %1536 = vmatpush.bf16.msra.mxu0 %v1426
        %1537 = vmatpush.bf16.msra.mxu0 %v1425
        %1538 = vmatpush.bf16.msra.mxu0 %v1424
        %1539 = vmatpush.bf16.msra.mxu0 %v1423
        %1540 = vmatpush.bf16.msra.mxu0 %v1422
        %1541 = vmatpush.bf16.msra.mxu0 %v1421
        %1542 = vmatmul.bf16.gmra.mxu0 %v1282
        %v1543 = vpop.f32.mrf.mxu0
        %v1544 = vadd.f32 %v1455, %v1543
        %v1545 = vpop.f32.mrf.mxu0
        %v1546 = vadd.f32 %v1457, %v1545
        %1547 = vmatmul.bf16.gmra.mxu0 %v1284
        %v1548 = vpop.f32.mrf.mxu0
        %v1549 = vadd.f32 %v1460, %v1548
        %v1550 = vpop.f32.mrf.mxu0
        %v1551 = vadd.f32 %v1462, %v1550
        %1552 = vmatmul.bf16.gmra.mxu0 %v1286
        %v1553 = vpop.f32.mrf.mxu0
        %v1554 = vadd.f32 %v1465, %v1553
        %v1555 = vpop.f32.mrf.mxu0
        %v1556 = vadd.f32 %v1467, %v1555
        %1557 = vmatmul.bf16.gmra.mxu0 %v1288
        %v1558 = vpop.f32.mrf.mxu0
        %v1559 = vadd.f32 %v1470, %v1558
        %v1560 = vpop.f32.mrf.mxu0
        %v1561 = vadd.f32 %v1472, %v1560
        %1562 = vmatmul.bf16.gmra.mxu0 %v1290
        %v1563 = vpop.f32.mrf.mxu0
        %v1564 = vadd.f32 %v1475, %v1563
        %v1565 = vpop.f32.mrf.mxu0
        %v1566 = vadd.f32 %v1477, %v1565
        %1567 = vmatmul.bf16.gmra.mxu0 %v1292
        %v1568 = vpop.f32.mrf.mxu0
        %v1569 = vadd.f32 %v1480, %v1568
        %v1570 = vpop.f32.mrf.mxu0
        %v1571 = vadd.f32 %v1482, %v1570
        %1572 = vmatmul.bf16.gmra.mxu0 %v1294
        %v1573 = vpop.f32.mrf.mxu0
        %v1574 = vadd.f32 %v1485, %v1573
        %v1575 = vpop.f32.mrf.mxu0
        %v1576 = vadd.f32 %v1487, %v1575
        %1577 = vmatmul.bf16.gmra.mxu0 %v1296
        %v1578 = vpop.f32.mrf.mxu0
        %v1579 = vadd.f32 %v1490, %v1578
        %v1580 = vpop.f32.mrf.mxu0
        %v1581 = vadd.f32 %v1492, %v1580
        %1582 = vmatmul.bf16.gmra.mxu0 %v1298
        %v1583 = vpop.f32.mrf.mxu0
        %v1584 = vadd.f32 %v1495, %v1583
        %v1585 = vpop.f32.mrf.mxu0
        %v1586 = vadd.f32 %v1497, %v1585
        %1587 = vmatmul.bf16.gmra.mxu0 %v1300
        %v1588 = vpop.f32.mrf.mxu0
        %v1589 = vadd.f32 %v1500, %v1588
        %v1590 = vpop.f32.mrf.mxu0
        %v1591 = vadd.f32 %v1502, %v1590
        %1592 = vmatmul.bf16.gmra.mxu0 %v1302
        %v1593 = vpop.f32.mrf.mxu0
        %v1594 = vadd.f32 %v1505, %v1593
        %v1595 = vpop.f32.mrf.mxu0
        %v1596 = vadd.f32 %v1507, %v1595
        %1597 = vmatmul.bf16.gmra.mxu0 %v1304
        %v1598 = vpop.f32.mrf.mxu0
        %v1599 = vadd.f32 %v1510, %v1598
        %v1600 = vpop.f32.mrf.mxu0
        %v1601 = vadd.f32 %v1512, %v1600
        %1602 = vmatmul.bf16.gmra.mxu0 %v1306
        %v1603 = vpop.f32.mrf.mxu0
        %v1604 = vadd.f32 %v1515, %v1603
        %v1605 = vpop.f32.mrf.mxu0
        %v1606 = vadd.f32 %v1517, %v1605
        %1607 = vmatmul.bf16.gmra.mxu0 %v1308
        %v1608 = vpop.f32.mrf.mxu0
        %v1609 = vadd.f32 %v1520, %v1608
        %v1610 = vpop.f32.mrf.mxu0
        %v1611 = vadd.f32 %v1522, %v1610
        %1612 = vmatmul.bf16.gmra.mxu0 %v1310
        %v1613 = vpop.f32.mrf.mxu0
        %v1614 = vadd.f32 %v1525, %v1613
        %v1615 = vpop.f32.mrf.mxu0
        %v1616 = vadd.f32 %v1527, %v1615
        %1617 = vmatmul.bf16.gmra.mxu0 %v1312
        %v1618 = vpop.f32.mrf.mxu0
        %v1619 = vadd.f32 %v1530, %v1618
        %v1620 = vpop.f32.mrf.mxu0
        %v1621 = vadd.f32 %v1532, %v1620
        %1622 = vdwg.mxu0
        %1623 = vadd.xlane.f32.xlu0 %v1544
        %v1624 = vpop.xlane.xlu0 %1623
        %1625 = vadd.xlane.f32.xlu0 %v1546
        %v1626 = vpop.xlane.xlu0 %1625
        %1627 = vadd.xlane.f32.xlu0 %v1549
        %v1628 = vpop.xlane.xlu0 %1627
        %1629 = vadd.xlane.f32.xlu0 %v1551
        %v1630 = vpop.xlane.xlu0 %1629
        %1631 = vadd.xlane.f32.xlu0 %v1554
        %v1632 = vpop.xlane.xlu0 %1631
        %1633 = vadd.xlane.f32.xlu0 %v1556
        %v1634 = vpop.xlane.xlu0 %1633
        %1635 = vadd.xlane.f32.xlu0 %v1559
        %v1636 = vpop.xlane.xlu0 %1635
        %1637 = vadd.xlane.f32.xlu0 %v1561
        %v1638 = vpop.xlane.xlu0 %1637
        %1639 = vadd.xlane.f32.xlu0 %v1564
        %v1640 = vpop.xlane.xlu0 %1639
        %1641 = vadd.xlane.f32.xlu0 %v1566
        %v1642 = vpop.xlane.xlu0 %1641
        %1643 = vadd.xlane.f32.xlu0 %v1569
        %v1644 = vpop.xlane.xlu0 %1643
        %1645 = vadd.xlane.f32.xlu0 %v1571
        %v1646 = vpop.xlane.xlu0 %1645
        %1647 = vadd.xlane.f32.xlu0 %v1574
        %v1648 = vpop.xlane.xlu0 %1647
        %1649 = vadd.xlane.f32.xlu0 %v1576
        %v1650 = vpop.xlane.xlu0 %1649
        %1651 = vadd.xlane.f32.xlu0 %v1579
        %v1652 = vpop.xlane.xlu0 %1651
        %1653 = vadd.xlane.f32.xlu0 %v1581
        %v1654 = vpop.xlane.xlu0 %1653
        %1655 = vadd.xlane.f32.xlu0 %v1584
        %v1656 = vpop.xlane.xlu0 %1655
        %1657 = vadd.xlane.f32.xlu0 %v1586
        %v1658 = vpop.xlane.xlu0 %1657
        %1659 = vadd.xlane.f32.xlu0 %v1589
        %v1660 = vpop.xlane.xlu0 %1659
        %1661 = vadd.xlane.f32.xlu0 %v1591
        %v1662 = vpop.xlane.xlu0 %1661
        %1663 = vadd.xlane.f32.xlu0 %v1594
        %v1664 = vpop.xlane.xlu0 %1663
        %1665 = vadd.xlane.f32.xlu0 %v1596
        %v1666 = vpop.xlane.xlu0 %1665
        %1667 = vadd.xlane.f32.xlu0 %v1599
        %v1668 = vpop.xlane.xlu0 %1667
        %1669 = vadd.xlane.f32.xlu0 %v1601
        %v1670 = vpop.xlane.xlu0 %1669
        %1671 = vadd.xlane.f32.xlu0 %v1604
        %v1672 = vpop.xlane.xlu0 %1671
        %1673 = vadd.xlane.f32.xlu0 %v1606
        %v1674 = vpop.xlane.xlu0 %1673
        %1675 = vadd.xlane.f32.xlu0 %v1609
        %v1676 = vpop.xlane.xlu0 %1675
        %1677 = vadd.xlane.f32.xlu0 %v1611
        %v1678 = vpop.xlane.xlu0 %1677
        %1679 = vadd.xlane.f32.xlu0 %v1614
        %v1680 = vpop.xlane.xlu0 %1679
        %1681 = vadd.xlane.f32.xlu0 %v1616
        %v1682 = vpop.xlane.xlu0 %1681
        %1683 = vadd.xlane.f32.xlu0 %v1619
        %v1684 = vpop.xlane.xlu0 %1683
        %1685 = vadd.xlane.f32.xlu0 %v1621
        %v1686 = vpop.xlane.xlu0 %1685
        %v1687 = vrcp.pop 128.0
        %v1688 = vmul.f32 128.0, %v1687
        %v1689 = vsub.f32 1.0, %v1688
        %v1690 = vmul.f32 %v1687, %v1689
        %v1691 = vadd.f32 %v1687, %v1690
        %vm1692 = vweird.f32 %v1687
        %v1693 = vsel %vm1692, %v1687, %v1691
        %v1694 = vmul.f32 %v1624, %v1693
        %v1695 = vmul.f32 %v1626, %v1693
        %v1696 = vmul.f32 %v1628, %v1693
        %v1697 = vmul.f32 %v1630, %v1693
        %v1698 = vmul.f32 %v1632, %v1693
        %v1699 = vmul.f32 %v1634, %v1693
        %v1700 = vmul.f32 %v1636, %v1693
        %v1701 = vmul.f32 %v1638, %v1693
        %v1702 = vmul.f32 %v1640, %v1693
        %v1703 = vmul.f32 %v1642, %v1693
        %v1704 = vmul.f32 %v1644, %v1693
        %v1705 = vmul.f32 %v1646, %v1693
        %v1706 = vmul.f32 %v1648, %v1693
        %v1707 = vmul.f32 %v1650, %v1693
        %v1708 = vmul.f32 %v1652, %v1693
        %v1709 = vmul.f32 %v1654, %v1693
        %v1710 = vmul.f32 %v1656, %v1693
        %v1711 = vmul.f32 %v1658, %v1693
        %v1712 = vmul.f32 %v1660, %v1693
        %v1713 = vmul.f32 %v1662, %v1693
        %v1714 = vmul.f32 %v1664, %v1693
        %v1715 = vmul.f32 %v1666, %v1693
        %v1716 = vmul.f32 %v1668, %v1693
        %v1717 = vmul.f32 %v1670, %v1693
        %v1718 = vmul.f32 %v1672, %v1693
        %v1719 = vmul.f32 %v1674, %v1693
        %v1720 = vmul.f32 %v1676, %v1693
        %v1721 = vmul.f32 %v1678, %v1693
        %v1722 = vmul.f32 %v1680, %v1693
        %v1723 = vmul.f32 %v1682, %v1693
        %v1724 = vmul.f32 %v1684, %v1693
        %v1725 = vmul.f32 %v1686, %v1693
        %v1726 = vsub.f32 %v1544, %v1694
        %v1727 = vsub.f32 %v1546, %v1695
        %v1728 = vsub.f32 %v1549, %v1696
        %v1729 = vsub.f32 %v1551, %v1697
        %v1730 = vsub.f32 %v1554, %v1698
        %v1731 = vsub.f32 %v1556, %v1699
        %v1732 = vsub.f32 %v1559, %v1700
        %v1733 = vsub.f32 %v1561, %v1701
        %v1734 = vsub.f32 %v1564, %v1702
        %v1735 = vsub.f32 %v1566, %v1703
        %v1736 = vsub.f32 %v1569, %v1704
        %v1737 = vsub.f32 %v1571, %v1705
        %v1738 = vsub.f32 %v1574, %v1706
        %v1739 = vsub.f32 %v1576, %v1707
        %v1740 = vsub.f32 %v1579, %v1708
        %v1741 = vsub.f32 %v1581, %v1709
        %v1742 = vsub.f32 %v1584, %v1710
        %v1743 = vsub.f32 %v1586, %v1711
        %v1744 = vsub.f32 %v1589, %v1712
        %v1745 = vsub.f32 %v1591, %v1713
        %v1746 = vsub.f32 %v1594, %v1714
        %v1747 = vsub.f32 %v1596, %v1715
        %v1748 = vsub.f32 %v1599, %v1716
        %v1749 = vsub.f32 %v1601, %v1717
        %v1750 = vsub.f32 %v1604, %v1718
        %v1751 = vsub.f32 %v1606, %v1719
        %v1752 = vsub.f32 %v1609, %v1720
        %v1753 = vsub.f32 %v1611, %v1721
        %v1754 = vsub.f32 %v1614, %v1722
        %v1755 = vsub.f32 %v1616, %v1723
        %v1756 = vsub.f32 %v1619, %v1724
        %v1757 = vsub.f32 %v1621, %v1725
        %v1758 = vmul.f32 %v1726, %v1726
        %v1759 = vmul.f32 %v1727, %v1727
        %v1760 = vmul.f32 %v1728, %v1728
        %v1761 = vmul.f32 %v1729, %v1729
        %v1762 = vmul.f32 %v1730, %v1730
        %v1763 = vmul.f32 %v1731, %v1731
        %v1764 = vmul.f32 %v1732, %v1732
        %v1765 = vmul.f32 %v1733, %v1733
        %v1766 = vmul.f32 %v1734, %v1734
        %v1767 = vmul.f32 %v1735, %v1735
        %v1768 = vmul.f32 %v1736, %v1736
        %v1769 = vmul.f32 %v1737, %v1737
        %v1770 = vmul.f32 %v1738, %v1738
        %v1771 = vmul.f32 %v1739, %v1739
        %v1772 = vmul.f32 %v1740, %v1740
        %v1773 = vmul.f32 %v1741, %v1741
        %v1774 = vmul.f32 %v1742, %v1742
        %v1775 = vmul.f32 %v1743, %v1743
        %v1776 = vmul.f32 %v1744, %v1744
        %v1777 = vmul.f32 %v1745, %v1745
        %v1778 = vmul.f32 %v1746, %v1746
        %v1779 = vmul.f32 %v1747, %v1747
        %v1780 = vmul.f32 %v1748, %v1748
        %v1781 = vmul.f32 %v1749, %v1749
        %v1782 = vmul.f32 %v1750, %v1750
        %v1783 = vmul.f32 %v1751, %v1751
        %v1784 = vmul.f32 %v1752, %v1752
        %v1785 = vmul.f32 %v1753, %v1753
        %v1786 = vmul.f32 %v1754, %v1754
        %v1787 = vmul.f32 %v1755, %v1755
        %v1788 = vmul.f32 %v1756, %v1756
        %v1789 = vmul.f32 %v1757, %v1757
        %1790 = vadd.xlane.f32.xlu0 %v1758
        %v1791 = vpop.xlane.xlu0 %1790
        %1792 = vadd.xlane.f32.xlu0 %v1759
        %v1793 = vpop.xlane.xlu0 %1792
        %1794 = vadd.xlane.f32.xlu0 %v1760
        %v1795 = vpop.xlane.xlu0 %1794
        %1796 = vadd.xlane.f32.xlu0 %v1761
        %v1797 = vpop.xlane.xlu0 %1796
        %1798 = vadd.xlane.f32.xlu0 %v1762
        %v1799 = vpop.xlane.xlu0 %1798
        %1800 = vadd.xlane.f32.xlu0 %v1763
        %v1801 = vpop.xlane.xlu0 %1800
        %1802 = vadd.xlane.f32.xlu0 %v1764
        %v1803 = vpop.xlane.xlu0 %1802
        %1804 = vadd.xlane.f32.xlu0 %v1765
        %v1805 = vpop.xlane.xlu0 %1804
        %1806 = vadd.xlane.f32.xlu0 %v1766
        %v1807 = vpop.xlane.xlu0 %1806
        %1808 = vadd.xlane.f32.xlu0 %v1767
        %v1809 = vpop.xlane.xlu0 %1808
        %1810 = vadd.xlane.f32.xlu0 %v1768
        %v1811 = vpop.xlane.xlu0 %1810
        %1812 = vadd.xlane.f32.xlu0 %v1769
        %v1813 = vpop.xlane.xlu0 %1812
        %1814 = vadd.xlane.f32.xlu0 %v1770
        %v1815 = vpop.xlane.xlu0 %1814
        %1816 = vadd.xlane.f32.xlu0 %v1771
        %v1817 = vpop.xlane.xlu0 %1816
        %1818 = vadd.xlane.f32.xlu0 %v1772
        %v1819 = vpop.xlane.xlu0 %1818
        %1820 = vadd.xlane.f32.xlu0 %v1773
        %v1821 = vpop.xlane.xlu0 %1820
        %1822 = vadd.xlane.f32.xlu0 %v1774
        %v1823 = vpop.xlane.xlu0 %1822
        %1824 = vadd.xlane.f32.xlu0 %v1775
        %v1825 = vpop.xlane.xlu0 %1824
        %1826 = vadd.xlane.f32.xlu0 %v1776
        %v1827 = vpop.xlane.xlu0 %1826
        %1828 = vadd.xlane.f32.xlu0 %v1777
        %v1829 = vpop.xlane.xlu0 %1828
        %1830 = vadd.xlane.f32.xlu0 %v1778
        %v1831 = vpop.xlane.xlu0 %1830
        %1832 = vadd.xlane.f32.xlu0 %v1779
        %v1833 = vpop.xlane.xlu0 %1832
        %1834 = vadd.xlane.f32.xlu0 %v1780
        %v1835 = vpop.xlane.xlu0 %1834
        %1836 = vadd.xlane.f32.xlu0 %v1781
        %v1837 = vpop.xlane.xlu0 %1836
        %1838 = vadd.xlane.f32.xlu0 %v1782
        %v1839 = vpop.xlane.xlu0 %1838
        %1840 = vadd.xlane.f32.xlu0 %v1783
        %v1841 = vpop.xlane.xlu0 %1840
        %1842 = vadd.xlane.f32.xlu0 %v1784
        %v1843 = vpop.xlane.xlu0 %1842
        %1844 = vadd.xlane.f32.xlu0 %v1785
        %v1845 = vpop.xlane.xlu0 %1844
        %1846 = vadd.xlane.f32.xlu0 %v1786
        %v1847 = vpop.xlane.xlu0 %1846
        %1848 = vadd.xlane.f32.xlu0 %v1787
        %v1849 = vpop.xlane.xlu0 %1848
        %1850 = vadd.xlane.f32.xlu0 %v1788
        %v1851 = vpop.xlane.xlu0 %1850
        %1852 = vadd.xlane.f32.xlu0 %v1789
        %v1853 = vpop.xlane.xlu0 %1852
        %v1854 = vmul.f32 %v1791, %v1693
        %v1855 = vmul.f32 %v1793, %v1693
        %v1856 = vmul.f32 %v1795, %v1693
        %v1857 = vmul.f32 %v1797, %v1693
        %v1858 = vmul.f32 %v1799, %v1693
        %v1859 = vmul.f32 %v1801, %v1693
        %v1860 = vmul.f32 %v1803, %v1693
        %v1861 = vmul.f32 %v1805, %v1693
        %v1862 = vmul.f32 %v1807, %v1693
        %v1863 = vmul.f32 %v1809, %v1693
        %v1864 = vmul.f32 %v1811, %v1693
        %v1865 = vmul.f32 %v1813, %v1693
        %v1866 = vmul.f32 %v1815, %v1693
        %v1867 = vmul.f32 %v1817, %v1693
        %v1868 = vmul.f32 %v1819, %v1693
        %v1869 = vmul.f32 %v1821, %v1693
        %v1870 = vmul.f32 %v1823, %v1693
        %v1871 = vmul.f32 %v1825, %v1693
        %v1872 = vmul.f32 %v1827, %v1693
        %v1873 = vmul.f32 %v1829, %v1693
        %v1874 = vmul.f32 %v1831, %v1693
        %v1875 = vmul.f32 %v1833, %v1693
        %v1876 = vmul.f32 %v1835, %v1693
        %v1877 = vmul.f32 %v1837, %v1693
        %v1878 = vmul.f32 %v1839, %v1693
        %v1879 = vmul.f32 %v1841, %v1693
        %v1880 = vmul.f32 %v1843, %v1693
        %v1881 = vmul.f32 %v1845, %v1693
        %v1882 = vmul.f32 %v1847, %v1693
        %v1883 = vmul.f32 %v1849, %v1693
        %v1884 = vmul.f32 %v1851, %v1693
        %v1885 = vmul.f32 %v1853, %v1693
        %v1886 = vadd.f32 %v1854, 1e-05
        %v1887 = vadd.f32 %v1855, 1e-05
        %v1888 = vadd.f32 %v1856, 1e-05
        %v1889 = vadd.f32 %v1857, 1e-05
        %v1890 = vadd.f32 %v1858, 1e-05
        %v1891 = vadd.f32 %v1859, 1e-05
        %v1892 = vadd.f32 %v1860, 1e-05
        %v1893 = vadd.f32 %v1861, 1e-05
        %v1894 = vadd.f32 %v1862, 1e-05
        %v1895 = vadd.f32 %v1863, 1e-05
        %v1896 = vadd.f32 %v1864, 1e-05
        %v1897 = vadd.f32 %v1865, 1e-05
        %v1898 = vadd.f32 %v1866, 1e-05
        %v1899 = vadd.f32 %v1867, 1e-05
        %v1900 = vadd.f32 %v1868, 1e-05
        %v1901 = vadd.f32 %v1869, 1e-05
        %v1902 = vadd.f32 %v1870, 1e-05
        %v1903 = vadd.f32 %v1871, 1e-05
        %v1904 = vadd.f32 %v1872, 1e-05
        %v1905 = vadd.f32 %v1873, 1e-05
        %v1906 = vadd.f32 %v1874, 1e-05
        %v1907 = vadd.f32 %v1875, 1e-05
        %v1908 = vadd.f32 %v1876, 1e-05
        %v1909 = vadd.f32 %v1877, 1e-05
        %v1910 = vadd.f32 %v1878, 1e-05
        %v1911 = vadd.f32 %v1879, 1e-05
        %v1912 = vadd.f32 %v1880, 1e-05
        %v1913 = vadd.f32 %v1881, 1e-05
        %v1914 = vadd.f32 %v1882, 1e-05
        %v1915 = vadd.f32 %v1883, 1e-05
        %v1916 = vadd.f32 %v1884, 1e-05
        %v1917 = vadd.f32 %v1885, 1e-05
        %v1918 = vrsqrt.pop %v1886
        %v1919 = vmul.f32 %v1918, %v1886
        %v1920 = vmul.f32 %v1919, %v1918
        %v1921 = vmul.f32 0.5, %v1920
        %v1922 = vsub.f32 1.5, %v1921
        %v1923 = vmul.f32 %v1918, %v1922
        %vm1924 = vweird.f32 %v1886
        %vm1925 = vweird.f32 %v1918
        %vm1926 = vmor %vm1924, %vm1925
        %v1927 = vsel %vm1926, %v1918, %v1923
        %v1928 = vrsqrt.pop %v1887
        %v1929 = vmul.f32 %v1928, %v1887
        %v1930 = vmul.f32 %v1929, %v1928
        %v1931 = vmul.f32 0.5, %v1930
        %v1932 = vsub.f32 1.5, %v1931
        %v1933 = vmul.f32 %v1928, %v1932
        %vm1934 = vweird.f32 %v1887
        %vm1935 = vweird.f32 %v1928
        %vm1936 = vmor %vm1934, %vm1935
        %v1937 = vsel %vm1936, %v1928, %v1933
        %v1938 = vrsqrt.pop %v1888
        %v1939 = vmul.f32 %v1938, %v1888
        %v1940 = vmul.f32 %v1939, %v1938
        %v1941 = vmul.f32 0.5, %v1940
        %v1942 = vsub.f32 1.5, %v1941
        %v1943 = vmul.f32 %v1938, %v1942
        %vm1944 = vweird.f32 %v1888
        %vm1945 = vweird.f32 %v1938
        %vm1946 = vmor %vm1944, %vm1945
        %v1947 = vsel %vm1946, %v1938, %v1943
        %v1948 = vrsqrt.pop %v1889
        %v1949 = vmul.f32 %v1948, %v1889
        %v1950 = vmul.f32 %v1949, %v1948
        %v1951 = vmul.f32 0.5, %v1950
        %v1952 = vsub.f32 1.5, %v1951
        %v1953 = vmul.f32 %v1948, %v1952
        %vm1954 = vweird.f32 %v1889
        %vm1955 = vweird.f32 %v1948
        %vm1956 = vmor %vm1954, %vm1955
        %v1957 = vsel %vm1956, %v1948, %v1953
        %v1958 = vrsqrt.pop %v1890
        %v1959 = vmul.f32 %v1958, %v1890
        %v1960 = vmul.f32 %v1959, %v1958
        %v1961 = vmul.f32 0.5, %v1960
        %v1962 = vsub.f32 1.5, %v1961
        %v1963 = vmul.f32 %v1958, %v1962
        %vm1964 = vweird.f32 %v1890
        %vm1965 = vweird.f32 %v1958
        %vm1966 = vmor %vm1964, %vm1965
        %v1967 = vsel %vm1966, %v1958, %v1963
        %v1968 = vrsqrt.pop %v1891
        %v1969 = vmul.f32 %v1968, %v1891
        %v1970 = vmul.f32 %v1969, %v1968
        %v1971 = vmul.f32 0.5, %v1970
        %v1972 = vsub.f32 1.5, %v1971
        %v1973 = vmul.f32 %v1968, %v1972
        %vm1974 = vweird.f32 %v1891
        %vm1975 = vweird.f32 %v1968
        %vm1976 = vmor %vm1974, %vm1975
        %v1977 = vsel %vm1976, %v1968, %v1973
        %v1978 = vrsqrt.pop %v1892
        %v1979 = vmul.f32 %v1978, %v1892
        %v1980 = vmul.f32 %v1979, %v1978
        %v1981 = vmul.f32 0.5, %v1980
        %v1982 = vsub.f32 1.5, %v1981
        %v1983 = vmul.f32 %v1978, %v1982
        %vm1984 = vweird.f32 %v1892
        %vm1985 = vweird.f32 %v1978
        %vm1986 = vmor %vm1984, %vm1985
        %v1987 = vsel %vm1986, %v1978, %v1983
        %v1988 = vrsqrt.pop %v1893
        %v1989 = vmul.f32 %v1988, %v1893
        %v1990 = vmul.f32 %v1989, %v1988
        %v1991 = vmul.f32 0.5, %v1990
        %v1992 = vsub.f32 1.5, %v1991
        %v1993 = vmul.f32 %v1988, %v1992
        %vm1994 = vweird.f32 %v1893
        %vm1995 = vweird.f32 %v1988
        %vm1996 = vmor %vm1994, %vm1995
        %v1997 = vsel %vm1996, %v1988, %v1993
        %v1998 = vrsqrt.pop %v1894
        %v1999 = vmul.f32 %v1998, %v1894
        %v2000 = vmul.f32 %v1999, %v1998
        %v2001 = vmul.f32 0.5, %v2000
        %v2002 = vsub.f32 1.5, %v2001
        %v2003 = vmul.f32 %v1998, %v2002
        %vm2004 = vweird.f32 %v1894
        %vm2005 = vweird.f32 %v1998
        %vm2006 = vmor %vm2004, %vm2005
        %v2007 = vsel %vm2006, %v1998, %v2003
        %v2008 = vrsqrt.pop %v1895
        %v2009 = vmul.f32 %v2008, %v1895
        %v2010 = vmul.f32 %v2009, %v2008
        %v2011 = vmul.f32 0.5, %v2010
        %v2012 = vsub.f32 1.5, %v2011
        %v2013 = vmul.f32 %v2008, %v2012
        %vm2014 = vweird.f32 %v1895
        %vm2015 = vweird.f32 %v2008
        %vm2016 = vmor %vm2014, %vm2015
        %v2017 = vsel %vm2016, %v2008, %v2013
        %v2018 = vrsqrt.pop %v1896
        %v2019 = vmul.f32 %v2018, %v1896
        %v2020 = vmul.f32 %v2019, %v2018
        %v2021 = vmul.f32 0.5, %v2020
        %v2022 = vsub.f32 1.5, %v2021
        %v2023 = vmul.f32 %v2018, %v2022
        %vm2024 = vweird.f32 %v1896
        %vm2025 = vweird.f32 %v2018
        %vm2026 = vmor %vm2024, %vm2025
        %v2027 = vsel %vm2026, %v2018, %v2023
        %v2028 = vrsqrt.pop %v1897
        %v2029 = vmul.f32 %v2028, %v1897
        %v2030 = vmul.f32 %v2029, %v2028
        %v2031 = vmul.f32 0.5, %v2030
        %v2032 = vsub.f32 1.5, %v2031
        %v2033 = vmul.f32 %v2028, %v2032
        %vm2034 = vweird.f32 %v1897
        %vm2035 = vweird.f32 %v2028
        %vm2036 = vmor %vm2034, %vm2035
        %v2037 = vsel %vm2036, %v2028, %v2033
        %v2038 = vrsqrt.pop %v1898
        %v2039 = vmul.f32 %v2038, %v1898
        %v2040 = vmul.f32 %v2039, %v2038
        %v2041 = vmul.f32 0.5, %v2040
        %v2042 = vsub.f32 1.5, %v2041
        %v2043 = vmul.f32 %v2038, %v2042
        %vm2044 = vweird.f32 %v1898
        %vm2045 = vweird.f32 %v2038
        %vm2046 = vmor %vm2044, %vm2045
        %v2047 = vsel %vm2046, %v2038, %v2043
        %v2048 = vrsqrt.pop %v1899
        %v2049 = vmul.f32 %v2048, %v1899
        %v2050 = vmul.f32 %v2049, %v2048
        %v2051 = vmul.f32 0.5, %v2050
        %v2052 = vsub.f32 1.5, %v2051
        %v2053 = vmul.f32 %v2048, %v2052
        %vm2054 = vweird.f32 %v1899
        %vm2055 = vweird.f32 %v2048
        %vm2056 = vmor %vm2054, %vm2055
        %v2057 = vsel %vm2056, %v2048, %v2053
        %v2058 = vrsqrt.pop %v1900
        %v2059 = vmul.f32 %v2058, %v1900
        %v2060 = vmul.f32 %v2059, %v2058
        %v2061 = vmul.f32 0.5, %v2060
        %v2062 = vsub.f32 1.5, %v2061
        %v2063 = vmul.f32 %v2058, %v2062
        %vm2064 = vweird.f32 %v1900
        %vm2065 = vweird.f32 %v2058
        %vm2066 = vmor %vm2064, %vm2065
        %v2067 = vsel %vm2066, %v2058, %v2063
        %v2068 = vrsqrt.pop %v1901
        %v2069 = vmul.f32 %v2068, %v1901
        %v2070 = vmul.f32 %v2069, %v2068
        %v2071 = vmul.f32 0.5, %v2070
        %v2072 = vsub.f32 1.5, %v2071
        %v2073 = vmul.f32 %v2068, %v2072
        %vm2074 = vweird.f32 %v1901
        %vm2075 = vweird.f32 %v2068
        %vm2076 = vmor %vm2074, %vm2075
        %v2077 = vsel %vm2076, %v2068, %v2073
        %v2078 = vrsqrt.pop %v1902
        %v2079 = vmul.f32 %v2078, %v1902
        %v2080 = vmul.f32 %v2079, %v2078
        %v2081 = vmul.f32 0.5, %v2080
        %v2082 = vsub.f32 1.5, %v2081
        %v2083 = vmul.f32 %v2078, %v2082
        %vm2084 = vweird.f32 %v1902
        %vm2085 = vweird.f32 %v2078
        %vm2086 = vmor %vm2084, %vm2085
        %v2087 = vsel %vm2086, %v2078, %v2083
        %v2088 = vrsqrt.pop %v1903
        %v2089 = vmul.f32 %v2088, %v1903
        %v2090 = vmul.f32 %v2089, %v2088
        %v2091 = vmul.f32 0.5, %v2090
        %v2092 = vsub.f32 1.5, %v2091
        %v2093 = vmul.f32 %v2088, %v2092
        %vm2094 = vweird.f32 %v1903
        %vm2095 = vweird.f32 %v2088
        %vm2096 = vmor %vm2094, %vm2095
        %v2097 = vsel %vm2096, %v2088, %v2093
        %v2098 = vrsqrt.pop %v1904
        %v2099 = vmul.f32 %v2098, %v1904
        %v2100 = vmul.f32 %v2099, %v2098
        %v2101 = vmul.f32 0.5, %v2100
        %v2102 = vsub.f32 1.5, %v2101
        %v2103 = vmul.f32 %v2098, %v2102
        %vm2104 = vweird.f32 %v1904
        %vm2105 = vweird.f32 %v2098
        %vm2106 = vmor %vm2104, %vm2105
        %v2107 = vsel %vm2106, %v2098, %v2103
        %v2108 = vrsqrt.pop %v1905
        %v2109 = vmul.f32 %v2108, %v1905
        %v2110 = vmul.f32 %v2109, %v2108
        %v2111 = vmul.f32 0.5, %v2110
        %v2112 = vsub.f32 1.5, %v2111
        %v2113 = vmul.f32 %v2108, %v2112
        %vm2114 = vweird.f32 %v1905
        %vm2115 = vweird.f32 %v2108
        %vm2116 = vmor %vm2114, %vm2115
        %v2117 = vsel %vm2116, %v2108, %v2113
        %v2118 = vrsqrt.pop %v1906
        %v2119 = vmul.f32 %v2118, %v1906
        %v2120 = vmul.f32 %v2119, %v2118
        %v2121 = vmul.f32 0.5, %v2120
        %v2122 = vsub.f32 1.5, %v2121
        %v2123 = vmul.f32 %v2118, %v2122
        %vm2124 = vweird.f32 %v1906
        %vm2125 = vweird.f32 %v2118
        %vm2126 = vmor %vm2124, %vm2125
        %v2127 = vsel %vm2126, %v2118, %v2123
        %v2128 = vrsqrt.pop %v1907
        %v2129 = vmul.f32 %v2128, %v1907
        %v2130 = vmul.f32 %v2129, %v2128
        %v2131 = vmul.f32 0.5, %v2130
        %v2132 = vsub.f32 1.5, %v2131
        %v2133 = vmul.f32 %v2128, %v2132
        %vm2134 = vweird.f32 %v1907
        %vm2135 = vweird.f32 %v2128
        %vm2136 = vmor %vm2134, %vm2135
        %v2137 = vsel %vm2136, %v2128, %v2133
        %v2138 = vrsqrt.pop %v1908
        %v2139 = vmul.f32 %v2138, %v1908
        %v2140 = vmul.f32 %v2139, %v2138
        %v2141 = vmul.f32 0.5, %v2140
        %v2142 = vsub.f32 1.5, %v2141
        %v2143 = vmul.f32 %v2138, %v2142
        %vm2144 = vweird.f32 %v1908
        %vm2145 = vweird.f32 %v2138
        %vm2146 = vmor %vm2144, %vm2145
        %v2147 = vsel %vm2146, %v2138, %v2143
        %v2148 = vrsqrt.pop %v1909
        %v2149 = vmul.f32 %v2148, %v1909
        %v2150 = vmul.f32 %v2149, %v2148
        %v2151 = vmul.f32 0.5, %v2150
        %v2152 = vsub.f32 1.5, %v2151
        %v2153 = vmul.f32 %v2148, %v2152
        %vm2154 = vweird.f32 %v1909
        %vm2155 = vweird.f32 %v2148
        %vm2156 = vmor %vm2154, %vm2155
        %v2157 = vsel %vm2156, %v2148, %v2153
        %v2158 = vrsqrt.pop %v1910
        %v2159 = vmul.f32 %v2158, %v1910
        %v2160 = vmul.f32 %v2159, %v2158
        %v2161 = vmul.f32 0.5, %v2160
        %v2162 = vsub.f32 1.5, %v2161
        %v2163 = vmul.f32 %v2158, %v2162
        %vm2164 = vweird.f32 %v1910
        %vm2165 = vweird.f32 %v2158
        %vm2166 = vmor %vm2164, %vm2165
        %v2167 = vsel %vm2166, %v2158, %v2163
        %v2168 = vrsqrt.pop %v1911
        %v2169 = vmul.f32 %v2168, %v1911
        %v2170 = vmul.f32 %v2169, %v2168
        %v2171 = vmul.f32 0.5, %v2170
        %v2172 = vsub.f32 1.5, %v2171
        %v2173 = vmul.f32 %v2168, %v2172
        %vm2174 = vweird.f32 %v1911
        %vm2175 = vweird.f32 %v2168
        %vm2176 = vmor %vm2174, %vm2175
        %v2177 = vsel %vm2176, %v2168, %v2173
        %v2178 = vrsqrt.pop %v1912
        %v2179 = vmul.f32 %v2178, %v1912
        %v2180 = vmul.f32 %v2179, %v2178
        %v2181 = vmul.f32 0.5, %v2180
        %v2182 = vsub.f32 1.5, %v2181
        %v2183 = vmul.f32 %v2178, %v2182
        %vm2184 = vweird.f32 %v1912
        %vm2185 = vweird.f32 %v2178
        %vm2186 = vmor %vm2184, %vm2185
        %v2187 = vsel %vm2186, %v2178, %v2183
        %v2188 = vrsqrt.pop %v1913
        %v2189 = vmul.f32 %v2188, %v1913
        %v2190 = vmul.f32 %v2189, %v2188
        %v2191 = vmul.f32 0.5, %v2190
        %v2192 = vsub.f32 1.5, %v2191
        %v2193 = vmul.f32 %v2188, %v2192
        %vm2194 = vweird.f32 %v1913
        %vm2195 = vweird.f32 %v2188
        %vm2196 = vmor %vm2194, %vm2195
        %v2197 = vsel %vm2196, %v2188, %v2193
        %v2198 = vrsqrt.pop %v1914
        %v2199 = vmul.f32 %v2198, %v1914
        %v2200 = vmul.f32 %v2199, %v2198
        %v2201 = vmul.f32 0.5, %v2200
        %v2202 = vsub.f32 1.5, %v2201
        %v2203 = vmul.f32 %v2198, %v2202
        %vm2204 = vweird.f32 %v1914
        %vm2205 = vweird.f32 %v2198
        %vm2206 = vmor %vm2204, %vm2205
        %v2207 = vsel %vm2206, %v2198, %v2203
        %v2208 = vrsqrt.pop %v1915
        %v2209 = vmul.f32 %v2208, %v1915
        %v2210 = vmul.f32 %v2209, %v2208
        %v2211 = vmul.f32 0.5, %v2210
        %v2212 = vsub.f32 1.5, %v2211
        %v2213 = vmul.f32 %v2208, %v2212
        %vm2214 = vweird.f32 %v1915
        %vm2215 = vweird.f32 %v2208
        %vm2216 = vmor %vm2214, %vm2215
        %v2217 = vsel %vm2216, %v2208, %v2213
        %v2218 = vrsqrt.pop %v1916
        %v2219 = vmul.f32 %v2218, %v1916
        %v2220 = vmul.f32 %v2219, %v2218
        %v2221 = vmul.f32 0.5, %v2220
        %v2222 = vsub.f32 1.5, %v2221
        %v2223 = vmul.f32 %v2218, %v2222
        %vm2224 = vweird.f32 %v1916
        %vm2225 = vweird.f32 %v2218
        %vm2226 = vmor %vm2224, %vm2225
        %v2227 = vsel %vm2226, %v2218, %v2223
        %v2228 = vrsqrt.pop %v1917
        %v2229 = vmul.f32 %v2228, %v1917
        %v2230 = vmul.f32 %v2229, %v2228
        %v2231 = vmul.f32 0.5, %v2230
        %v2232 = vsub.f32 1.5, %v2231
        %v2233 = vmul.f32 %v2228, %v2232
        %vm2234 = vweird.f32 %v1917
        %vm2235 = vweird.f32 %v2228
        %vm2236 = vmor %vm2234, %vm2235
        %v2237 = vsel %vm2236, %v2228, %v2233
        %v2238 = vmul.f32 %v1726, %v1927
        %v2239 = vmul.f32 %v1727, %v1937
        %v2240 = vmul.f32 %v1728, %v1947
        %v2241 = vmul.f32 %v1729, %v1957
        %v2242 = vmul.f32 %v1730, %v1967
        %v2243 = vmul.f32 %v1731, %v1977
        %v2244 = vmul.f32 %v1732, %v1987
        %v2245 = vmul.f32 %v1733, %v1997
        %v2246 = vmul.f32 %v1734, %v2007
        %v2247 = vmul.f32 %v1735, %v2017
        %v2248 = vmul.f32 %v1736, %v2027
        %v2249 = vmul.f32 %v1737, %v2037
        %v2250 = vmul.f32 %v1738, %v2047
        %v2251 = vmul.f32 %v1739, %v2057
        %v2252 = vmul.f32 %v1740, %v2067
        %v2253 = vmul.f32 %v1741, %v2077
        %v2254 = vmul.f32 %v1742, %v2087
        %v2255 = vmul.f32 %v1743, %v2097
        %v2256 = vmul.f32 %v1744, %v2107
        %v2257 = vmul.f32 %v1745, %v2117
        %v2258 = vmul.f32 %v1746, %v2127
        %v2259 = vmul.f32 %v1747, %v2137
        %v2260 = vmul.f32 %v1748, %v2147
        %v2261 = vmul.f32 %v1749, %v2157
        %v2262 = vmul.f32 %v1750, %v2167
        %v2263 = vmul.f32 %v1751, %v2177
        %v2264 = vmul.f32 %v1752, %v2187
        %v2265 = vmul.f32 %v1753, %v2197
        %v2266 = vmul.f32 %v1754, %v2207
        %v2267 = vmul.f32 %v1755, %v2217
        %v2268 = vmul.f32 %v1756, %v2227
        %v2269 = vmul.f32 %v1757, %v2237
        %v2270 = vld [vmem:[%s3] sm:$0x1]
        %v2272 = vperm.slane %v2270, 0
        %v2274 = vmul.f32 %v2238, %v2272
        %v2275 = vmul.f32 %v2239, %v2272
        %v2276 = vmul.f32 %v2240, %v2272
        %v2277 = vmul.f32 %v2241, %v2272
        %v2278 = vmul.f32 %v2242, %v2272
        %v2279 = vmul.f32 %v2243, %v2272
        %v2280 = vmul.f32 %v2244, %v2272
        %v2281 = vmul.f32 %v2245, %v2272
        %v2282 = vmul.f32 %v2246, %v2272
        %v2283 = vmul.f32 %v2247, %v2272
        %v2284 = vmul.f32 %v2248, %v2272
        %v2285 = vmul.f32 %v2249, %v2272
        %v2286 = vmul.f32 %v2250, %v2272
        %v2287 = vmul.f32 %v2251, %v2272
        %v2288 = vmul.f32 %v2252, %v2272
        %v2289 = vmul.f32 %v2253, %v2272
        %v2290 = vmul.f32 %v2254, %v2272
        %v2291 = vmul.f32 %v2255, %v2272
        %v2292 = vmul.f32 %v2256, %v2272
        %v2293 = vmul.f32 %v2257, %v2272
        %v2294 = vmul.f32 %v2258, %v2272
        %v2295 = vmul.f32 %v2259, %v2272
        %v2296 = vmul.f32 %v2260, %v2272
        %v2297 = vmul.f32 %v2261, %v2272
        %v2298 = vmul.f32 %v2262, %v2272
        %v2299 = vmul.f32 %v2263, %v2272
        %v2300 = vmul.f32 %v2264, %v2272
        %v2301 = vmul.f32 %v2265, %v2272
        %v2302 = vmul.f32 %v2266, %v2272
        %v2303 = vmul.f32 %v2267, %v2272
        %v2304 = vmul.f32 %v2268, %v2272
        %v2305 = vmul.f32 %v2269, %v2272
        %v2306 = vld [vmem:[%s4] sm:$0x1]
        %v2308 = vperm.slane %v2306, 0
        %v2310 = vadd.f32 %v2274, %v2308
        %v2311 = vadd.f32 %v2275, %v2308
        %v2312 = vadd.f32 %v2276, %v2308
        %v2313 = vadd.f32 %v2277, %v2308
        %v2314 = vadd.f32 %v2278, %v2308
        %v2315 = vadd.f32 %v2279, %v2308
        %v2316 = vadd.f32 %v2280, %v2308
        %v2317 = vadd.f32 %v2281, %v2308
        %v2318 = vadd.f32 %v2282, %v2308
        %v2319 = vadd.f32 %v2283, %v2308
        %v2320 = vadd.f32 %v2284, %v2308
        %v2321 = vadd.f32 %v2285, %v2308
        %v2322 = vadd.f32 %v2286, %v2308
        %v2323 = vadd.f32 %v2287, %v2308
        %v2324 = vadd.f32 %v2288, %v2308
        %v2325 = vadd.f32 %v2289, %v2308
        %v2326 = vadd.f32 %v2290, %v2308
        %v2327 = vadd.f32 %v2291, %v2308
        %v2328 = vadd.f32 %v2292, %v2308
        %v2329 = vadd.f32 %v2293, %v2308
        %v2330 = vadd.f32 %v2294, %v2308
        %v2331 = vadd.f32 %v2295, %v2308
        %v2332 = vadd.f32 %v2296, %v2308
        %v2333 = vadd.f32 %v2297, %v2308
        %v2334 = vadd.f32 %v2298, %v2308
        %v2335 = vadd.f32 %v2299, %v2308
        %v2336 = vadd.f32 %v2300, %v2308
        %v2337 = vadd.f32 %v2301, %v2308
        %v2338 = vadd.f32 %v2302, %v2308
        %v2339 = vadd.f32 %v2303, %v2308
        %v2340 = vadd.f32 %v2304, %v2308
        %v2341 = vadd.f32 %v2305, %v2308
        %v2342 = vpack.c.bf16 %v2310, %v2310
        %v2343 = vpack.c.bf16 %v2311, %v2311
        %v2344 = vpack.c.bf16 %v2312, %v2312
        %v2345 = vpack.c.bf16 %v2313, %v2313
        %v2346 = vpack.c.bf16 %v2314, %v2314
        %v2347 = vpack.c.bf16 %v2315, %v2315
        %v2348 = vpack.c.bf16 %v2316, %v2316
        %v2349 = vpack.c.bf16 %v2317, %v2317
        %v2350 = vpack.c.bf16 %v2318, %v2318
        %v2351 = vpack.c.bf16 %v2319, %v2319
        %v2352 = vpack.c.bf16 %v2320, %v2320
        %v2353 = vpack.c.bf16 %v2321, %v2321
        %v2354 = vpack.c.bf16 %v2322, %v2322
        %v2355 = vpack.c.bf16 %v2323, %v2323
        %v2356 = vpack.c.bf16 %v2324, %v2324
        %v2357 = vpack.c.bf16 %v2325, %v2325
        %v2358 = vpack.c.bf16 %v2326, %v2326
        %v2359 = vpack.c.bf16 %v2327, %v2327
        %v2360 = vpack.c.bf16 %v2328, %v2328
        %v2361 = vpack.c.bf16 %v2329, %v2329
        %v2362 = vpack.c.bf16 %v2330, %v2330
        %v2363 = vpack.c.bf16 %v2331, %v2331
        %v2364 = vpack.c.bf16 %v2332, %v2332
        %v2365 = vpack.c.bf16 %v2333, %v2333
        %v2366 = vpack.c.bf16 %v2334, %v2334
        %v2367 = vpack.c.bf16 %v2335, %v2335
        %v2368 = vpack.c.bf16 %v2336, %v2336
        %v2369 = vpack.c.bf16 %v2337, %v2337
        %v2370 = vpack.c.bf16 %v2338, %v2338
        %v2371 = vpack.c.bf16 %v2339, %v2339
        %v2372 = vpack.c.bf16 %v2340, %v2340
        %v2373 = vpack.c.bf16 %v2341, %v2341
        %2374 = vst [vmem:[%s279] sm:$0xf] %v2342
        %2375 = vst [vmem:[%s279 + $0x4] sm:$0xf] %v2343
        %2376 = vst [vmem:[%s279 + $0x8] sm:$0xf] %v2344
        %2377 = vst [vmem:[%s279 + $0xc] sm:$0xf] %v2345
        %2378 = vst [vmem:[%s279 + $0x10] sm:$0xf] %v2346
        %2379 = vst [vmem:[%s279 + $0x14] sm:$0xf] %v2347
        %2380 = vst [vmem:[%s279 + $0x18] sm:$0xf] %v2348
        %2381 = vst [vmem:[%s279 + $0x1c] sm:$0xf] %v2349
        %2382 = vst [vmem:[%s279 + $0x20] sm:$0xf] %v2350
        %2383 = vst [vmem:[%s279 + $0x24] sm:$0xf] %v2351
        %2384 = vst [vmem:[%s279 + $0x28] sm:$0xf] %v2352
        %2385 = vst [vmem:[%s279 + $0x2c] sm:$0xf] %v2353
        %2386 = vst [vmem:[%s279 + $0x30] sm:$0xf] %v2354
        %2387 = vst [vmem:[%s279 + $0x34] sm:$0xf] %v2355
        %2388 = vst [vmem:[%s279 + $0x38] sm:$0xf] %v2356
        %2389 = vst [vmem:[%s279 + $0x3c] sm:$0xf] %v2357
        %2390 = vst [vmem:[%s279 + $0x40] sm:$0xf] %v2358
        %2391 = vst [vmem:[%s279 + $0x44] sm:$0xf] %v2359
        %2392 = vst [vmem:[%s279 + $0x48] sm:$0xf] %v2360
        %2393 = vst [vmem:[%s279 + $0x4c] sm:$0xf] %v2361
        %2394 = vst [vmem:[%s279 + $0x50] sm:$0xf] %v2362
        %2395 = vst [vmem:[%s279 + $0x54] sm:$0xf] %v2363
        %2396 = vst [vmem:[%s279 + $0x58] sm:$0xf] %v2364
        %2397 = vst [vmem:[%s279 + $0x5c] sm:$0xf] %v2365
        %2398 = vst [vmem:[%s279 + $0x60] sm:$0xf] %v2366
        %2399 = vst [vmem:[%s279 + $0x64] sm:$0xf] %v2367
        %2400 = vst [vmem:[%s279 + $0x68] sm:$0xf] %v2368
        %2401 = vst [vmem:[%s279 + $0x6c] sm:$0xf] %v2369
        %2402 = vst [vmem:[%s279 + $0x70] sm:$0xf] %v2370
        %2403 = vst [vmem:[%s279 + $0x74] sm:$0xf] %v2371
        %2404 = vst [vmem:[%s279 + $0x78] sm:$0xf] %v2372
        %2405 = vst [vmem:[%s279 + $0x7c] sm:$0xf] %v2373
        %s2406 = sand.u32 %s157, 1
        %s2407 = scalar_lea.sflag [#allocation4], %s2406
        %s2408 = sand.u32 %s157, 1
        %s2409 = smul.addr %s2408, 128
        %s2410 = scalar_lea.vmem [#allocation7], %s2409
        // Predicated region
        $region49: #{adapter_pallas.1} parent=39 // pred_check
          %p2411 = pneg %p167
        $region50: #{adapter_pallas.1} parent=39 // pred_check_branch
          %2413 = sbr.rel (%p2411) target = $region52
        $region51: #{adapter_pallas.1} parent=39 // pred_region
          %s2414 = smul.u32 32, %s28
          %2416 = vsyncadd %s2407, 0
          %s2417 = smul.addr %s27, 32
          %s2418 = sadd.s32 %s2414, %s2417
          %s2419 = smul.addr %s2418, 4
          %s2420 = scalar_lea.hbm %s5, %s2419
          %s2421 = sshll.u32 %s2410, 4
          %s2422 = int_to_ptr.vmem [resolvable:$true] %s2421
          %s2423 = sshll.u32 %s2420, 4
          %s2424 = int_to_ptr.hbm [resolvable:$true] %s2423
          %2429 = dma.vmem_to_hbm [thread:$0]  %s2422, 2048, %s2424, %s2407, 64, 64, 4
        $region52: #{adapter_pallas.1} parent=39 // pred_fallthru
          _
      $region40: #{adapter_pallas.1} parent=5 // pred_fallthru
        _
      %p2430 = scmp.le.s32.totalorder 2, %s18
      // Predicated region
      $region53: #{adapter_pallas.1} parent=5 // pred_check
        %p2431 = pneg %p2430
      $region54: #{adapter_pallas.1} parent=5 // pred_check_branch
        %2433 = sbr.rel (%p2431) target = $region56
      $region55: #{adapter_pallas.1} parent=5 // pred_region
        %s2434 = ssub.s32 %s18, 2
        // Predicated region
        $region57: #{adapter_pallas.1} parent=55 // pred_check
          %p2435 = pneg %p173
        $region58: #{adapter_pallas.1} parent=55 // pred_check_branch
          %2437 = sbr.rel (%p2435) target = $region60
        $region59: #{adapter_pallas.1} parent=55 // pred_region
          %s2438 = sand.u32 %s158, 1
          %s2439 = scalar_lea.sflag [#allocation4], %s2438
          %s2440 = sand.u32 %s158, 1
          %s2441 = smul.addr %s2440, 128
          %s2442 = scalar_lea.vmem [#allocation7], %s2441
          %2444 = dma.done %s2439, 2048
        $region60: #{adapter_pallas.1} parent=55 // pred_fallthru
          _
      $region56: #{adapter_pallas.1} parent=5 // pred_fallthru
        _
    $region6: #{adapter_pallas.1} parent=1 // loop_footer
      %s22 = sadd.s32 1, %s18
    $region7: #{adapter_pallas.1} parent=1 // loop_footer_branch
      %17 = sbr.rel target = $region3
    $region8: #{adapter_pallas.1} parent=1 // loop_exit
      _
    %2445 = vsyncpa [#allocation3], 1
    %s2446 = scalar_lea.sflag [#allocation3], 1
    %2447 = vsyncpa %s2446, 1
    %2448 = vsyncpa [#allocation6], 1
    %2449 = vsyncpa [#allocation4], 1
    %s2450 = scalar_lea.sflag [#allocation4], 1
    %2451 = vsyncpa %s2450, 1

</llo_original>
